<compile_context>
chip_gen: v7x
topology: tpu7x:2x2x1
jax: 0.10.0
libtpu: 0.0.40
codegen_flags: <defaults>
</compile_context>

<pallas_src>
import math
import functools

import jax
import jax.numpy as jnp
from jax import lax
from jax.experimental import pallas as pl
from jax.experimental.pallas import tpu as pltpu


def _vmem_limit_bytes():
    """~75% of physical VMEM, capped at 96 MiB (v5e/v6e: 128 MiB phys, v7x: 64 MiB)."""
    try:
        cap = int(pltpu.get_tpu_info().vmem_capacity_bytes)
        return min((cap * 3) // 4, 96 * 1024 * 1024)
    except Exception:
        return 48 * 1024 * 1024


_VMEM_LIMIT = _vmem_limit_bytes()


def _pick_tile(dim, cap, align):
    """Largest tile <= cap that divides `dim` and is `align`-aligned, else full dim."""
    if dim <= cap:
        return dim
    t = (cap // align) * align
    while t >= align:
        if dim % t == 0:
            return t
        t -= align
    # TODO(synk): pad awkward (prime-ish) dims instead of falling back to full dim.
    return dim


# --------------------------------------------------------------------------
# [1] Fused LayerNorm + Linear (+ bias, optional activation)
# --------------------------------------------------------------------------
def _ln_linear_kernel(x_ref, g_ref, b_ref, w_ref, bias_ref, o_ref,
                      *, eps, activation, mxu_dtype):
    f32 = jnp.float32
    x = x_ref[...].astype(f32)                                   # (tm, D)
    mean = jnp.mean(x, axis=-1, keepdims=True)
    xc = x - mean
    var = jnp.mean(xc * xc, axis=-1, keepdims=True)
    xn = (xc * lax.rsqrt(var + eps)) * g_ref[...].astype(f32) + b_ref[...].astype(f32)
    lhs = xn if mxu_dtype is None else xn.astype(mxu_dtype)
    rhs = w_ref[...].astype(f32) if mxu_dtype is None else w_ref[...].astype(mxu_dtype)
    y = jnp.dot(lhs, rhs, preferred_element_type=f32) + bias_ref[...].astype(f32)
    if activation == "relu":
        y = jnp.maximum(y, 0.0)
    elif activation == "gelu":
        y = jax.nn.gelu(y, approximate=False)
    elif activation is not None:
        raise ValueError(activation)
    o_ref[...] = y.astype(o_ref.dtype)


def ln_linear(x, gamma, beta, w, bias, *, eps, activation=None,
              mxu_dtype=None, out_dtype=None):
    m, d = x.shape
    _, n_out = w.shape
    out_dtype = x.dtype if out_dtype is None else out_dtype
    tm = _pick_tile(m, 512, 8)
    tn = _pick_tile(n_out, 2048, 128)
    n_j = n_out // tn
    grid = (m // tm, n_j)
    isz = int(x.dtype.itemsize)
    cost = pl.CostEstimate(
        flops=int(2 * m * n_out * d + 8 * m * d * n_j),
        transcendentals=int(m * n_j),
        bytes_accessed=int((m * d * n_j + d * n_out + n_out + m * n_out + 2 * d) * isz))
    return pl.pallas_call(
        functools.partial(_ln_linear_kernel, eps=eps, activation=activation,
                          mxu_dtype=mxu_dtype),
        out_shape=jax.ShapeDtypeStruct((m, n_out), out_dtype),
        grid=grid,
        in_specs=[
            pl.BlockSpec((tm, d), lambda i, j: (i, 0)),
            pl.BlockSpec((1, d), lambda i, j: (0, 0)),
            pl.BlockSpec((1, d), lambda i, j: (0, 0)),
            pl.BlockSpec((d, tn), lambda i, j: (0, j)),
            pl.BlockSpec((1, tn), lambda i, j: (0, j)),
        ],
        out_specs=pl.BlockSpec((tm, tn), lambda i, j: (i, j)),
        compiler_params=pltpu.CompilerParams(
            dimension_semantics=("parallel", "parallel"),
            vmem_limit_bytes=_VMEM_LIMIT),
        cost_estimate=cost,
    )(x, gamma.reshape(1, d), beta.reshape(1, d), w, bias.reshape(1, n_out))


# --------------------------------------------------------------------------
# [2] Multi-head attention (per batch element; heads sliced in-kernel)
# --------------------------------------------------------------------------
def _mha_block(qkv, S, D, H, hd, scale, mxu_dtype):
    """qkv: (S, 3D) tile for one batch element -> (S, D) attention output (f32)."""
    f32 = jnp.float32

    def mx(t):
        return t if mxu_dtype is None else t.astype(mxu_dtype)

    head_outs = []
    for h in range(H):
        q = qkv[:, h * hd:(h + 1) * hd].astype(f32) * scale          # scale folded into q
        k = qkv[:, D + h * hd:D + (h + 1) * hd].astype(f32)
        v = qkv[:, 2 * D + h * hd:2 * D + (h + 1) * hd].astype(f32)
        # Contract last dims directly (no explicit K transpose), f32 MXU accumulation.
        s = lax.dot_general(mx(q), mx(k), (((1,), (1,)), ((), ())),
                            preferred_element_type=f32)              # (S, S)
        m = jnp.max(s, axis=-1, keepdims=True)
        p = jnp.exp(s - m)
        l = jnp.sum(p, axis=-1, keepdims=True)
        o = jnp.dot(mx(p), mx(v), preferred_element_type=f32)        # (S, hd)
        # EUP reciprocal + one Newton step (cheap, keeps full f32 accuracy).
        inv = pl.reciprocal(l, approx=True)
        inv = inv * (2.0 - l * inv)
        head_outs.append(o * inv)
    return jnp.concatenate(head_outs, axis=-1)                        # (S, D)


def _attention_kernel_seq(qkv_ref, o_ref, *, S, D, H, hd, nb, scale, mxu_dtype):
    # qkv_ref: (S, nb*3D); o_ref: (S, nb*D)   [seq-major token layout]
    for b in range(nb):
        blk = qkv_ref[:, b * 3 * D:(b + 1) * 3 * D]
        out = _mha_block(blk, S, D, H, hd, scale, mxu_dtype)
        o_ref[:, b * D:(b + 1) * D] = out.astype(o_ref.dtype)


def _attention_kernel_bm(qkv_ref, o_ref, *, S, D, H, hd, scale, mxu_dtype):
    # qkv_ref: (1, S, 3D); o_ref: (1, S, D)   [batch-major token layout]
    out = _mha_block(qkv_ref[0], S, D, H, hd, scale, mxu_dtype)
    o_ref[0] = out.astype(o_ref.dtype)


def attention(qkv2d, *, S, B, D, H, scale, seq_major, mxu_dtype=None):
    """qkv2d: (N, 3D) with rows in (s,b) order (seq_major) or (b,s) order.

    Returns (N, D) in the same row order.  Head split/merge is done via
    BlockSpec column blocking + in-kernel slicing (no XLA transposes).
    """
    hd = D // H
    isz = int(qkv2d.dtype.itemsize)
    cost = pl.CostEstimate(
        flops=int(4 * B * H * S * S * hd),
        transcendentals=int(B * H * S * S),
        bytes_accessed=int(4 * B * S * D * isz))
    cparams = pltpu.CompilerParams(dimension_semantics=("parallel",),
                                   vmem_limit_bytes=_VMEM_LIMIT)
    if not seq_major:
        # (b, s) row order -> (B, S, 3D) view; one grid step per batch element.
        qkv3 = qkv2d.reshape(B, S, 3 * D)
        out = pl.pallas_call(
            functools.partial(_attention_kernel_bm, S=S, D=D, H=H, hd=hd,
                              scale=scale, mxu_dtype=mxu_dtype),
            out_shape=jax.ShapeDtypeStruct((B, S, D), qkv2d.dtype),
            grid=(B,),
            in_specs=[pl.BlockSpec((1, S, 3 * D), lambda b: (b, 0, 0))],
            out_specs=pl.BlockSpec((1, S, D), lambda b: (b, 0, 0)),
            compiler_params=cparams,
            cost_estimate=cost,
        )(qkv3)
        return out.reshape(B * S, D)

    # (s, b) row order (PyTorch default batch_first=False): view as (S, B*3D).
    # Column-block one batch element per grid step when lane alignment allows,
    # otherwise process all batch elements in a single full-array step.
    if D % 128 == 0 and (3 * D) % 128 == 0 and B > 1:
        nb, grid = 1, (B,)
    else:
        nb, grid = B, (1,)
    qkvw = qkv2d.reshape(S, B * 3 * D)
    out = pl.pallas_call(
        functools.partial(_attention_kernel_seq, S=S, D=D, H=H, hd=hd, nb=nb,
                          scale=scale, mxu_dtype=mxu_dtype),
        out_shape=jax.ShapeDtypeStruct((S, B * D), qkv2d.dtype),
        grid=grid,
        in_specs=[pl.BlockSpec((S, nb * 3 * D), lambda b: (0, b))],
        out_specs=pl.BlockSpec((S, nb * D), lambda b: (0, b)),
        compiler_params=cparams,
        cost_estimate=cost,
    )(qkvw)
    return out.reshape(S * B, D)


# --------------------------------------------------------------------------
# [3] Fused out-proj + residual + LayerNorm2 + FFN + residual
# --------------------------------------------------------------------------
def _attn_out_ffn_kernel(a_ref, x_ref, wo_ref, bo_ref, g2_ref, b2_ref,
                         w1_ref, b1_ref, w2_ref, c2_ref, o_ref,
                         *, eps, activation, mxu_dtype):
    f32 = jnp.float32

    def mx(t):
        return t.astype(f32) if mxu_dtype is None else t.astype(mxu_dtype)

    # y = x + out_proj(attn)                     (dropout1 identity in eval)
    y = (x_ref[...].astype(f32)
         + jnp.dot(mx(a_ref[...]), mx(wo_ref[...]), preferred_element_type=f32)
         + bo_ref[...].astype(f32))
    # LayerNorm2
    mean = jnp.mean(y, axis=-1, keepdims=True)
    yc = y - mean
    var = jnp.mean(yc * yc, axis=-1, keepdims=True)
    hn = (yc * lax.rsqrt(var + eps)) * g2_ref[...].astype(f32) + b2_ref[...].astype(f32)
    # FFN: linear1 -> act -> linear2             (dropout/dropout2 identity in eval)
    h = jnp.dot(mx(hn), mx(w1_ref[...]), preferred_element_type=f32) + b1_ref[...].astype(f32)
    if activation == "relu":
        h = jnp.maximum(h, 0.0)
    elif activation == "gelu":
        h = jax.nn.gelu(h, approximate=False)
    else:
        raise ValueError(activation)
    out = y + jnp.dot(mx(h), mx(w2_ref[...]), preferred_element_type=f32) + c2_ref[...].astype(f32)
    o_ref[...] = out.astype(o_ref.dtype)


def attn_out_ffn(attn2d, x2d, wo, bo, g2, b2, w1, b1, w2, c2,
                 *, eps, activation, mxu_dtype=None):
    m, d = x2d.shape
    ff = w1.shape[1]
    tm = _pick_tile(m, 512, 8)
    grid = (m // tm,)
    isz = int(x2d.dtype.itemsize)
    cost = pl.CostEstimate(
        flops=int(2 * m * d * d + 4 * m * d * ff + 16 * m * d),
        transcendentals=int(m),
        bytes_accessed=int((3 * m * d + d * d + 2 * d * ff + 2 * ff + 5 * d) * isz))
    tile_spec = pl.BlockSpec((tm, d), lambda i: (i, 0))
    row_d = pl.BlockSpec((1, d), lambda i: (0, 0))
    return pl.pallas_call(
        functools.partial(_attn_out_ffn_kernel, eps=eps, activation=activation,
                          mxu_dtype=mxu_dtype),
        out_shape=jax.ShapeDtypeStruct((m, d), x2d.dtype),
        grid=grid,
        in_specs=[
            tile_spec,                                   # attention output
            tile_spec,                                   # residual x
            pl.BlockSpec((d, d), lambda i: (0, 0)),      # Wo
            row_d,                                       # bo
            row_d,                                       # ln2 gamma
            row_d,                                       # ln2 beta
            pl.BlockSpec((d, ff), lambda i: (0, 0)),     # W1
            pl.BlockSpec((1, ff), lambda i: (0, 0)),     # b1
            pl.BlockSpec((ff, d), lambda i: (0, 0)),     # W2
            row_d,                                       # b2 (linear2 bias)
        ],
        out_specs=pl.BlockSpec((tm, d), lambda i: (i, 0)),
        compiler_params=pltpu.CompilerParams(
            dimension_semantics=("parallel",),
            vmem_limit_bytes=_VMEM_LIMIT),
        cost_estimate=cost,
    )(attn2d, x2d, wo, bo.reshape(1, d), g2.reshape(1, d), b2.reshape(1, d),
      w1, b1.reshape(1, ff), w2, c2.reshape(1, d))


# --------------------------------------------------------------------------
# Full encoder layer forward (norm_first=True, eval mode)
# --------------------------------------------------------------------------
def encoder_layer_forward(params, src, *, nhead, eps=1e-5, activation="relu",
                          batch_first=False, mxu_dtype=None):
    if batch_first:
        B, S, D = src.shape
    else:
        S, B, D = src.shape
    H = nhead
    hd = D // H
    scale = 1.0 / math.sqrt(hd)
    N = S * B

    # Lane-dense 2-D token view; row order is (s,b) for batch_first=False,
    # (b,s) for batch_first=True. Per-token kernels are row-order agnostic.
    x2d = src.reshape(N, D)
    inter_dtype = mxu_dtype if mxu_dtype is not None else x2d.dtype

    # [1] LayerNorm1 + QKV in-projection (fused)           -> (N, 3D)
    qkv = ln_linear(x2d, params["ln1_g"], params["ln1_b"],
                    params["in_w"], params["in_b"],
                    eps=eps, mxu_dtype=mxu_dtype, out_dtype=inter_dtype)

    # [2] multi-head self-attention                        -> (N, D)
    attn2d = attention(qkv, S=S, B=B, D=D, H=H, scale=scale,
                       seq_major=not batch_first, mxu_dtype=mxu_dtype)

    # [3] out-proj + residual + LayerNorm2 + FFN + residual (fused) -> (N, D)
    out2d = attn_out_ffn(attn2d, x2d, params["out_w"], params["out_b"],
                         params["ln2_g"], params["ln2_b"],
                         params["w1"], params["b1"], params["w2"], params["b2"],
                         eps=eps, activation=activation, mxu_dtype=mxu_dtype)

    return out2d.reshape(src.shape)


# --------------------------------------------------------------------------
# Pure-JAX reference (same math, no Pallas) for correctness check
# --------------------------------------------------------------------------
def reference_forward(params, src, *, nhead, eps=1e-5, activation="relu",
                      batch_first=False):
    if batch_first:
        B, S, D = src.shape
    else:
        S, B, D = src.shape
    H = nhead
    hd = D // H
    x = src.reshape(S * B, D) if not batch_first else src.reshape(B * S, D)

    def ln(z, g, b):
        m = jnp.mean(z, axis=-1, keepdims=True)
        v = jnp.mean((z - m) ** 2, axis=-1, keepdims=True)
        return (z - m) / jnp.sqrt(v + eps) * g + b

    if activation == "relu":
        act = lambda z: jnp.maximum(z, 0.0)
    else:
        act = lambda z: jax.nn.gelu(z, approximate=False)

    xn = ln(x, params["ln1_g"], params["ln1_b"])
    qkv = xn @ params["in_w"] + params["in_b"]
    if batch_first:
        qkv5 = jnp.transpose(qkv.reshape(B, S, 3, H, hd), (2, 0, 3, 1, 4))
    else:
        qkv5 = jnp.transpose(qkv.reshape(S, B, 3, H, hd), (2, 1, 3, 0, 4))
    q, k, v = qkv5.reshape(3, B * H, S, hd)
    s = jnp.einsum("bqd,bkd->bqk", q, k) / math.sqrt(hd)
    p = jax.nn.softmax(s, axis=-1)
    a = jnp.einsum("bqk,bkd->bqd", p, v)
    if batch_first:
        a2 = a.reshape(B, H, S, hd).transpose(0, 2, 1, 3).reshape(B * S, D)
    else:
        a2 = a.reshape(B, H, S, hd).transpose(2, 0, 1, 3).reshape(S * B, D)
    x = x + (a2 @ params["out_w"] + params["out_b"])

    xn = ln(x, params["ln2_g"], params["ln2_b"])
    h = act(xn @ params["w1"] + params["b1"])
    x = x + (h @ params["w2"] + params["b2"])
    return x.reshape(src.shape)


if __name__ == "__main__":
    def make_params(key, D, FF, dtype):
        keys = jax.random.split(key, 12)

        def rnd(k, shape, scl=0.1):
            return scl * jax.random.normal(k, shape, dtype=dtype)

        return dict(
            ln1_g=1.0 + rnd(keys[0], (D,)), ln1_b=rnd(keys[1], (D,)),
            ln2_g=1.0 + rnd(keys[2], (D,)), ln2_b=rnd(keys[3], (D,)),
            in_w=rnd(keys[4], (D, 3 * D)),  in_b=rnd(keys[5], (3 * D,)),
            out_w=rnd(keys[6], (D, D)),     out_b=rnd(keys[7], (D,)),
            w1=rnd(keys[8], (D, FF)),       b1=rnd(keys[9], (FF,)),
            w2=rnd(keys[10], (FF, D)),      b2=rnd(keys[11], (D,)),
        )

    # ---- small shapes consistent with the module (batch_first=False layout) ----
    S, B, D, H, FF = 8, 2, 32, 4, 64
    params = make_params(jax.random.PRNGKey(0), D, FF, jnp.float32)
    src = jax.random.normal(jax.random.PRNGKey(1), (S, B, D), dtype=jnp.float32)

    fwd = jax.jit(functools.partial(encoder_layer_forward, nhead=H, eps=1e-5,
                                    activation="relu"))
    out = fwd(params, src)
    jax.block_until_ready(out)
    ref = reference_forward(params, src, nhead=H, eps=1e-5, activation="relu")
    assert out.shape == src.shape and out.dtype == src.dtype
    err = float(jnp.max(jnp.abs(out - ref)))
    assert jnp.allclose(out, ref, atol=1e-3, rtol=1e-3), f"f32 small-shape err={err}"

    # ---- bf16 MXU path (same shape, looser tolerance) ----
    fwd_bf16 = jax.jit(functools.partial(encoder_layer_forward, nhead=H, eps=1e-5,
                                         activation="relu", mxu_dtype=jnp.bfloat16))
    out_b = fwd_bf16(params, src)
    jax.block_until_ready(out_b)
    err_b = float(jnp.max(jnp.abs(out_b.astype(jnp.float32) - ref)))
    assert jnp.allclose(out_b.astype(jnp.float32), ref, atol=5e-2, rtol=5e-2), \
        f"bf16 path err={err_b}"

    # ---- medium shape exercising multi-tile grids and column-blocked attention ----
    S2, B2, D2, H2, FF2 = 256, 4, 128, 4, 512
    params2 = make_params(jax.random.PRNGKey(2), D2, FF2, jnp.float32)
    src2 = jax.random.normal(jax.random.PRNGKey(3), (S2, B2, D2), dtype=jnp.float32)
    fwd2 = jax.jit(functools.partial(encoder_layer_forward, nhead=H2, eps=1e-5,
                                     activation="relu"))
    out2 = fwd2(params2, src2)
    jax.block_until_ready(out2)
    ref2 = reference_forward(params2, src2, nhead=H2, eps=1e-5, activation="relu")
    err2 = float(jnp.max(jnp.abs(out2 - ref2)))
    assert jnp.allclose(out2, ref2, atol=2e-3, rtol=2e-3), f"f32 medium-shape err={err2}"

    print("KERNEL_OK")
</pallas_src>

<mosaic_0001>
module attributes {stable_mosaic.version = 11 : i64} {
  func.func @_attention_kernel_seq(%arg0: i32, %arg1: memref<8x192xf32, #tpu.memory_space<vmem>>, %arg2: memref<8x64xf32, #tpu.memory_space<vmem>>) attributes {dimension_semantics = [#tpu.dimension_semantics<parallel>], iteration_bounds = array<i64: 1>, scalar_prefetch = 0 : i64, scratch_operands = 0 : i64, tpu.core_type = #tpu.core_type<tc>, window_params = [{transform_indices = @transform_0, window_bounds = array<i64: 8, 192>}, {transform_indices = @transform_1, window_bounds = array<i64: 8, 64>}]} {
    %c0 = arith.constant 0 : index
    %c0_0 = arith.constant 0 : index
    %0 = vector.load %arg1[%c0, %c0_0] : memref<8x192xf32, #tpu.memory_space<vmem>>, vector<8x96xf32>
    %1 = vector.extract_strided_slice %0 {offsets = [0, 0], sizes = [8, 8], strides = [1, 1]} : vector<8x96xf32> to vector<8x8xf32>
    %cst = arith.constant 0.353553385 : f32
    %2 = vector.broadcast %cst : f32 to vector<8x8xf32>
    %3 = arith.mulf %1, %2 : vector<8x8xf32>
    %4 = vector.extract_strided_slice %0 {offsets = [0, 32], sizes = [8, 8], strides = [1, 1]} : vector<8x96xf32> to vector<8x8xf32>
    %5 = vector.extract_strided_slice %0 {offsets = [0, 64], sizes = [8, 8], strides = [1, 1]} : vector<8x96xf32> to vector<8x8xf32>
    %cst_1 = arith.constant dense<0.000000e+00> : vector<8x8xf32>
    %6 = tpu.matmul %3, %4, %cst_1 {dimension_numbers = #tpu.dot_dimension_numbers<[1], [1], [0], [0], [0, 0, 1, 0], [], []>} : vector<8x8xf32>, vector<8x8xf32>, vector<8x8xf32> -> vector<8x8xf32>
    %cst_2 = arith.constant dense<0xFF800000> : vector<8xf32>
    %7 = vector.multi_reduction <maximumf>, %6, %cst_2 [1] : vector<8x8xf32> to vector<8xf32>
    %8 = vector.shape_cast %7 : vector<8xf32> to vector<8x1xf32>
    %9 = vector.broadcast %8 : vector<8x1xf32> to vector<8x8xf32>
    %10 = arith.subf %6, %9 : vector<8x8xf32>
    %11 = math.exp %10 : vector<8x8xf32>
    %cst_3 = arith.constant dense<0.000000e+00> : vector<8xf32>
    %12 = vector.multi_reduction <add>, %11, %cst_3 [1] : vector<8x8xf32> to vector<8xf32>
    %13 = vector.shape_cast %12 : vector<8xf32> to vector<8x1xf32>
    %cst_4 = arith.constant dense<0.000000e+00> : vector<8x8xf32>
    %14 = tpu.matmul %11, %5, %cst_4 {dimension_numbers = #tpu.dot_dimension_numbers<[1], [0], [0], [1], [0, 0, 1, 1], [], []>} : vector<8x8xf32>, vector<8x8xf32>, vector<8x8xf32> -> vector<8x8xf32>
    %15 = tpu.reciprocal %13 {approx = true} : vector<8x1xf32> -> vector<8x1xf32>
    %16 = arith.mulf %13, %15 : vector<8x1xf32>
    %cst_5 = arith.constant 2.000000e+00 : f32
    %17 = vector.broadcast %cst_5 : f32 to vector<8x1xf32>
    %18 = arith.subf %17, %16 : vector<8x1xf32>
    %19 = arith.mulf %15, %18 : vector<8x1xf32>
    %20 = vector.broadcast %19 : vector<8x1xf32> to vector<8x8xf32>
    %21 = arith.mulf %14, %20 : vector<8x8xf32>
    %22 = vector.extract_strided_slice %0 {offsets = [0, 8], sizes = [8, 8], strides = [1, 1]} : vector<8x96xf32> to vector<8x8xf32>
    %cst_6 = arith.constant 0.353553385 : f32
    %23 = vector.broadcast %cst_6 : f32 to vector<8x8xf32>
    %24 = arith.mulf %22, %23 : vector<8x8xf32>
    %25 = vector.extract_strided_slice %0 {offsets = [0, 40], sizes = [8, 8], strides = [1, 1]} : vector<8x96xf32> to vector<8x8xf32>
    %26 = vector.extract_strided_slice %0 {offsets = [0, 72], sizes = [8, 8], strides = [1, 1]} : vector<8x96xf32> to vector<8x8xf32>
    %cst_7 = arith.constant dense<0.000000e+00> : vector<8x8xf32>
    %27 = tpu.matmul %24, %25, %cst_7 {dimension_numbers = #tpu.dot_dimension_numbers<[1], [1], [0], [0], [0, 0, 1, 0], [], []>} : vector<8x8xf32>, vector<8x8xf32>, vector<8x8xf32> -> vector<8x8xf32>
    %cst_8 = arith.constant dense<0xFF800000> : vector<8xf32>
    %28 = vector.multi_reduction <maximumf>, %27, %cst_8 [1] : vector<8x8xf32> to vector<8xf32>
    %29 = vector.shape_cast %28 : vector<8xf32> to vector<8x1xf32>
    %30 = vector.broadcast %29 : vector<8x1xf32> to vector<8x8xf32>
    %31 = arith.subf %27, %30 : vector<8x8xf32>
    %32 = math.exp %31 : vector<8x8xf32>
    %cst_9 = arith.constant dense<0.000000e+00> : vector<8xf32>
    %33 = vector.multi_reduction <add>, %32, %cst_9 [1] : vector<8x8xf32> to vector<8xf32>
    %34 = vector.shape_cast %33 : vector<8xf32> to vector<8x1xf32>
    %cst_10 = arith.constant dense<0.000000e+00> : vector<8x8xf32>
    %35 = tpu.matmul %32, %26, %cst_10 {dimension_numbers = #tpu.dot_dimension_numbers<[1], [0], [0], [1], [0, 0, 1, 1], [], []>} : vector<8x8xf32>, vector<8x8xf32>, vector<8x8xf32> -> vector<8x8xf32>
    %36 = tpu.reciprocal %34 {approx = true} : vector<8x1xf32> -> vector<8x1xf32>
    %37 = arith.mulf %34, %36 : vector<8x1xf32>
    %cst_11 = arith.constant 2.000000e+00 : f32
    %38 = vector.broadcast %cst_11 : f32 to vector<8x1xf32>
    %39 = arith.subf %38, %37 : vector<8x1xf32>
    %40 = arith.mulf %36, %39 : vector<8x1xf32>
    %41 = vector.broadcast %40 : vector<8x1xf32> to vector<8x8xf32>
    %42 = arith.mulf %35, %41 : vector<8x8xf32>
    %43 = vector.extract_strided_slice %0 {offsets = [0, 16], sizes = [8, 8], strides = [1, 1]} : vector<8x96xf32> to vector<8x8xf32>
    %cst_12 = arith.constant 0.353553385 : f32
    %44 = vector.broadcast %cst_12 : f32 to vector<8x8xf32>
    %45 = arith.mulf %43, %44 : vector<8x8xf32>
    %46 = vector.extract_strided_slice %0 {offsets = [0, 48], sizes = [8, 8], strides = [1, 1]} : vector<8x96xf32> to vector<8x8xf32>
    %47 = vector.extract_strided_slice %0 {offsets = [0, 80], sizes = [8, 8], strides = [1, 1]} : vector<8x96xf32> to vector<8x8xf32>
    %cst_13 = arith.constant dense<0.000000e+00> : vector<8x8xf32>
    %48 = tpu.matmul %45, %46, %cst_13 {dimension_numbers = #tpu.dot_dimension_numbers<[1], [1], [0], [0], [0, 0, 1, 0], [], []>} : vector<8x8xf32>, vector<8x8xf32>, vector<8x8xf32> -> vector<8x8xf32>
    %cst_14 = arith.constant dense<0xFF800000> : vector<8xf32>
    %49 = vector.multi_reduction <maximumf>, %48, %cst_14 [1] : vector<8x8xf32> to vector<8xf32>
    %50 = vector.shape_cast %49 : vector<8xf32> to vector<8x1xf32>
    %51 = vector.broadcast %50 : vector<8x1xf32> to vector<8x8xf32>
    %52 = arith.subf %48, %51 : vector<8x8xf32>
    %53 = math.exp %52 : vector<8x8xf32>
    %cst_15 = arith.constant dense<0.000000e+00> : vector<8xf32>
    %54 = vector.multi_reduction <add>, %53, %cst_15 [1] : vector<8x8xf32> to vector<8xf32>
    %55 = vector.shape_cast %54 : vector<8xf32> to vector<8x1xf32>
    %cst_16 = arith.constant dense<0.000000e+00> : vector<8x8xf32>
    %56 = tpu.matmul %53, %47, %cst_16 {dimension_numbers = #tpu.dot_dimension_numbers<[1], [0], [0], [1], [0, 0, 1, 1], [], []>} : vector<8x8xf32>, vector<8x8xf32>, vector<8x8xf32> -> vector<8x8xf32>
    %57 = tpu.reciprocal %55 {approx = true} : vector<8x1xf32> -> vector<8x1xf32>
    %58 = arith.mulf %55, %57 : vector<8x1xf32>
    %cst_17 = arith.constant 2.000000e+00 : f32
    %59 = vector.broadcast %cst_17 : f32 to vector<8x1xf32>
    %60 = arith.subf %59, %58 : vector<8x1xf32>
    %61 = arith.mulf %57, %60 : vector<8x1xf32>
    %62 = vector.broadcast %61 : vector<8x1xf32> to vector<8x8xf32>
    %63 = arith.mulf %56, %62 : vector<8x8xf32>
    %64 = vector.extract_strided_slice %0 {offsets = [0, 24], sizes = [8, 8], strides = [1, 1]} : vector<8x96xf32> to vector<8x8xf32>
    %cst_18 = arith.constant 0.353553385 : f32
    %65 = vector.broadcast %cst_18 : f32 to vector<8x8xf32>
    %66 = arith.mulf %64, %65 : vector<8x8xf32>
    %67 = vector.extract_strided_slice %0 {offsets = [0, 56], sizes = [8, 8], strides = [1, 1]} : vector<8x96xf32> to vector<8x8xf32>
    %68 = vector.extract_strided_slice %0 {offsets = [0, 88], sizes = [8, 8], strides = [1, 1]} : vector<8x96xf32> to vector<8x8xf32>
    %cst_19 = arith.constant dense<0.000000e+00> : vector<8x8xf32>
    %69 = tpu.matmul %66, %67, %cst_19 {dimension_numbers = #tpu.dot_dimension_numbers<[1], [1], [0], [0], [0, 0, 1, 0], [], []>} : vector<8x8xf32>, vector<8x8xf32>, vector<8x8xf32> -> vector<8x8xf32>
    %cst_20 = arith.constant dense<0xFF800000> : vector<8xf32>
    %70 = vector.multi_reduction <maximumf>, %69, %cst_20 [1] : vector<8x8xf32> to vector<8xf32>
    %71 = vector.shape_cast %70 : vector<8xf32> to vector<8x1xf32>
    %72 = vector.broadcast %71 : vector<8x1xf32> to vector<8x8xf32>
    %73 = arith.subf %69, %72 : vector<8x8xf32>
    %74 = math.exp %73 : vector<8x8xf32>
    %cst_21 = arith.constant dense<0.000000e+00> : vector<8xf32>
    %75 = vector.multi_reduction <add>, %74, %cst_21 [1] : vector<8x8xf32> to vector<8xf32>
    %76 = vector.shape_cast %75 : vector<8xf32> to vector<8x1xf32>
    %cst_22 = arith.constant dense<0.000000e+00> : vector<8x8xf32>
    %77 = tpu.matmul %74, %68, %cst_22 {dimension_numbers = #tpu.dot_dimension_numbers<[1], [0], [0], [1], [0, 0, 1, 1], [], []>} : vector<8x8xf32>, vector<8x8xf32>, vector<8x8xf32> -> vector<8x8xf32>
    %78 = tpu.reciprocal %76 {approx = true} : vector<8x1xf32> -> vector<8x1xf32>
    %79 = arith.mulf %76, %78 : vector<8x1xf32>
    %cst_23 = arith.constant 2.000000e+00 : f32
    %80 = vector.broadcast %cst_23 : f32 to vector<8x1xf32>
    %81 = arith.subf %80, %79 : vector<8x1xf32>
    %82 = arith.mulf %78, %81 : vector<8x1xf32>
    %83 = vector.broadcast %82 : vector<8x1xf32> to vector<8x8xf32>
    %84 = arith.mulf %77, %83 : vector<8x8xf32>
    %85 = tpu.concatenate %21, %42, %63, %84 in 1 : vector<8x8xf32>, vector<8x8xf32>, vector<8x8xf32>, vector<8x8xf32> -> vector<8x32xf32>
    %c0_24 = arith.constant 0 : index
    %c0_25 = arith.constant 0 : index
    %86 = vector.load %arg2[%c0_24, %c0_25] : memref<8x64xf32, #tpu.memory_space<vmem>>, vector<8x32xf32>
    tpu.vector_store %arg2[%c0_24, %c0_25], %85 {strides = array<i32>} : memref<8x64xf32, #tpu.memory_space<vmem>>, vector<8x32xf32>,
    %c0_26 = arith.constant 0 : index
    %c96 = arith.constant 96 : index
    %87 = vector.load %arg1[%c0_26, %c96] : memref<8x192xf32, #tpu.memory_space<vmem>>, vector<8x96xf32>
    %88 = vector.extract_strided_slice %87 {offsets = [0, 0], sizes = [8, 8], strides = [1, 1]} : vector<8x96xf32> to vector<8x8xf32>
    %cst_27 = arith.constant 0.353553385 : f32
    %89 = vector.broadcast %cst_27 : f32 to vector<8x8xf32>
    %90 = arith.mulf %88, %89 : vector<8x8xf32>
    %91 = vector.extract_strided_slice %87 {offsets = [0, 32], sizes = [8, 8], strides = [1, 1]} : vector<8x96xf32> to vector<8x8xf32>
    %92 = vector.extract_strided_slice %87 {offsets = [0, 64], sizes = [8, 8], strides = [1, 1]} : vector<8x96xf32> to vector<8x8xf32>
    %cst_28 = arith.constant dense<0.000000e+00> : vector<8x8xf32>
    %93 = tpu.matmul %90, %91, %cst_28 {dimension_numbers = #tpu.dot_dimension_numbers<[1], [1], [0], [0], [0, 0, 1, 0], [], []>} : vector<8x8xf32>, vector<8x8xf32>, vector<8x8xf32> -> vector<8x8xf32>
    %cst_29 = arith.constant dense<0xFF800000> : vector<8xf32>
    %94 = vector.multi_reduction <maximumf>, %93, %cst_29 [1] : vector<8x8xf32> to vector<8xf32>
    %95 = vector.shape_cast %94 : vector<8xf32> to vector<8x1xf32>
    %96 = vector.broadcast %95 : vector<8x1xf32> to vector<8x8xf32>
    %97 = arith.subf %93, %96 : vector<8x8xf32>
    %98 = math.exp %97 : vector<8x8xf32>
    %cst_30 = arith.constant dense<0.000000e+00> : vector<8xf32>
    %99 = vector.multi_reduction <add>, %98, %cst_30 [1] : vector<8x8xf32> to vector<8xf32>
    %100 = vector.shape_cast %99 : vector<8xf32> to vector<8x1xf32>
    %cst_31 = arith.constant dense<0.000000e+00> : vector<8x8xf32>
    %101 = tpu.matmul %98, %92, %cst_31 {dimension_numbers = #tpu.dot_dimension_numbers<[1], [0], [0], [1], [0, 0, 1, 1], [], []>} : vector<8x8xf32>, vector<8x8xf32>, vector<8x8xf32> -> vector<8x8xf32>
    %102 = tpu.reciprocal %100 {approx = true} : vector<8x1xf32> -> vector<8x1xf32>
    %103 = arith.mulf %100, %102 : vector<8x1xf32>
    %cst_32 = arith.constant 2.000000e+00 : f32
    %104 = vector.broadcast %cst_32 : f32 to vector<8x1xf32>
    %105 = arith.subf %104, %103 : vector<8x1xf32>
    %106 = arith.mulf %102, %105 : vector<8x1xf32>
    %107 = vector.broadcast %106 : vector<8x1xf32> to vector<8x8xf32>
    %108 = arith.mulf %101, %107 : vector<8x8xf32>
    %109 = vector.extract_strided_slice %87 {offsets = [0, 8], sizes = [8, 8], strides = [1, 1]} : vector<8x96xf32> to vector<8x8xf32>
    %cst_33 = arith.constant 0.353553385 : f32
    %110 = vector.broadcast %cst_33 : f32 to vector<8x8xf32>
    %111 = arith.mulf %109, %110 : vector<8x8xf32>
    %112 = vector.extract_strided_slice %87 {offsets = [0, 40], sizes = [8, 8], strides = [1, 1]} : vector<8x96xf32> to vector<8x8xf32>
    %113 = vector.extract_strided_slice %87 {offsets = [0, 72], sizes = [8, 8], strides = [1, 1]} : vector<8x96xf32> to vector<8x8xf32>
    %cst_34 = arith.constant dense<0.000000e+00> : vector<8x8xf32>
    %114 = tpu.matmul %111, %112, %cst_34 {dimension_numbers = #tpu.dot_dimension_numbers<[1], [1], [0], [0], [0, 0, 1, 0], [], []>} : vector<8x8xf32>, vector<8x8xf32>, vector<8x8xf32> -> vector<8x8xf32>
    %cst_35 = arith.constant dense<0xFF800000> : vector<8xf32>
    %115 = vector.multi_reduction <maximumf>, %114, %cst_35 [1] : vector<8x8xf32> to vector<8xf32>
    %116 = vector.shape_cast %115 : vector<8xf32> to vector<8x1xf32>
    %117 = vector.broadcast %116 : vector<8x1xf32> to vector<8x8xf32>
    %118 = arith.subf %114, %117 : vector<8x8xf32>
    %119 = math.exp %118 : vector<8x8xf32>
    %cst_36 = arith.constant dense<0.000000e+00> : vector<8xf32>
    %120 = vector.multi_reduction <add>, %119, %cst_36 [1] : vector<8x8xf32> to vector<8xf32>
    %121 = vector.shape_cast %120 : vector<8xf32> to vector<8x1xf32>
    %cst_37 = arith.constant dense<0.000000e+00> : vector<8x8xf32>
    %122 = tpu.matmul %119, %113, %cst_37 {dimension_numbers = #tpu.dot_dimension_numbers<[1], [0], [0], [1], [0, 0, 1, 1], [], []>} : vector<8x8xf32>, vector<8x8xf32>, vector<8x8xf32> -> vector<8x8xf32>
    %123 = tpu.reciprocal %121 {approx = true} : vector<8x1xf32> -> vector<8x1xf32>
    %124 = arith.mulf %121, %123 : vector<8x1xf32>
    %cst_38 = arith.constant 2.000000e+00 : f32
    %125 = vector.broadcast %cst_38 : f32 to vector<8x1xf32>
    %126 = arith.subf %125, %124 : vector<8x1xf32>
    %127 = arith.mulf %123, %126 : vector<8x1xf32>
    %128 = vector.broadcast %127 : vector<8x1xf32> to vector<8x8xf32>
    %129 = arith.mulf %122, %128 : vector<8x8xf32>
    %130 = vector.extract_strided_slice %87 {offsets = [0, 16], sizes = [8, 8], strides = [1, 1]} : vector<8x96xf32> to vector<8x8xf32>
    %cst_39 = arith.constant 0.353553385 : f32
    %131 = vector.broadcast %cst_39 : f32 to vector<8x8xf32>
    %132 = arith.mulf %130, %131 : vector<8x8xf32>
    %133 = vector.extract_strided_slice %87 {offsets = [0, 48], sizes = [8, 8], strides = [1, 1]} : vector<8x96xf32> to vector<8x8xf32>
    %134 = vector.extract_strided_slice %87 {offsets = [0, 80], sizes = [8, 8], strides = [1, 1]} : vector<8x96xf32> to vector<8x8xf32>
    %cst_40 = arith.constant dense<0.000000e+00> : vector<8x8xf32>
    %135 = tpu.matmul %132, %133, %cst_40 {dimension_numbers = #tpu.dot_dimension_numbers<[1], [1], [0], [0], [0, 0, 1, 0], [], []>} : vector<8x8xf32>, vector<8x8xf32>, vector<8x8xf32> -> vector<8x8xf32>
    %cst_41 = arith.constant dense<0xFF800000> : vector<8xf32>
    %136 = vector.multi_reduction <maximumf>, %135, %cst_41 [1] : vector<8x8xf32> to vector<8xf32>
    %137 = vector.shape_cast %136 : vector<8xf32> to vector<8x1xf32>
    %138 = vector.broadcast %137 : vector<8x1xf32> to vector<8x8xf32>
    %139 = arith.subf %135, %138 : vector<8x8xf32>
    %140 = math.exp %139 : vector<8x8xf32>
    %cst_42 = arith.constant dense<0.000000e+00> : vector<8xf32>
    %141 = vector.multi_reduction <add>, %140, %cst_42 [1] : vector<8x8xf32> to vector<8xf32>
    %142 = vector.shape_cast %141 : vector<8xf32> to vector<8x1xf32>
    %cst_43 = arith.constant dense<0.000000e+00> : vector<8x8xf32>
    %143 = tpu.matmul %140, %134, %cst_43 {dimension_numbers = #tpu.dot_dimension_numbers<[1], [0], [0], [1], [0, 0, 1, 1], [], []>} : vector<8x8xf32>, vector<8x8xf32>, vector<8x8xf32> -> vector<8x8xf32>
    %144 = tpu.reciprocal %142 {approx = true} : vector<8x1xf32> -> vector<8x1xf32>
    %145 = arith.mulf %142, %144 : vector<8x1xf32>
    %cst_44 = arith.constant 2.000000e+00 : f32
    %146 = vector.broadcast %cst_44 : f32 to vector<8x1xf32>
    %147 = arith.subf %146, %145 : vector<8x1xf32>
    %148 = arith.mulf %144, %147 : vector<8x1xf32>
    %149 = vector.broadcast %148 : vector<8x1xf32> to vector<8x8xf32>
    %150 = arith.mulf %143, %149 : vector<8x8xf32>
    %151 = vector.extract_strided_slice %87 {offsets = [0, 24], sizes = [8, 8], strides = [1, 1]} : vector<8x96xf32> to vector<8x8xf32>
    %cst_45 = arith.constant 0.353553385 : f32
    %152 = vector.broadcast %cst_45 : f32 to vector<8x8xf32>
    %153 = arith.mulf %151, %152 : vector<8x8xf32>
    %154 = vector.extract_strided_slice %87 {offsets = [0, 56], sizes = [8, 8], strides = [1, 1]} : vector<8x96xf32> to vector<8x8xf32>
    %155 = vector.extract_strided_slice %87 {offsets = [0, 88], sizes = [8, 8], strides = [1, 1]} : vector<8x96xf32> to vector<8x8xf32>
    %cst_46 = arith.constant dense<0.000000e+00> : vector<8x8xf32>
    %156 = tpu.matmul %153, %154, %cst_46 {dimension_numbers = #tpu.dot_dimension_numbers<[1], [1], [0], [0], [0, 0, 1, 0], [], []>} : vector<8x8xf32>, vector<8x8xf32>, vector<8x8xf32> -> vector<8x8xf32>
    %cst_47 = arith.constant dense<0xFF800000> : vector<8xf32>
    %157 = vector.multi_reduction <maximumf>, %156, %cst_47 [1] : vector<8x8xf32> to vector<8xf32>
    %158 = vector.shape_cast %157 : vector<8xf32> to vector<8x1xf32>
    %159 = vector.broadcast %158 : vector<8x1xf32> to vector<8x8xf32>
    %160 = arith.subf %156, %159 : vector<8x8xf32>
    %161 = math.exp %160 : vector<8x8xf32>
    %cst_48 = arith.constant dense<0.000000e+00> : vector<8xf32>
    %162 = vector.multi_reduction <add>, %161, %cst_48 [1] : vector<8x8xf32> to vector<8xf32>
    %163 = vector.shape_cast %162 : vector<8xf32> to vector<8x1xf32>
    %cst_49 = arith.constant dense<0.000000e+00> : vector<8x8xf32>
    %164 = tpu.matmul %161, %155, %cst_49 {dimension_numbers = #tpu.dot_dimension_numbers<[1], [0], [0], [1], [0, 0, 1, 1], [], []>} : vector<8x8xf32>, vector<8x8xf32>, vector<8x8xf32> -> vector<8x8xf32>
    %165 = tpu.reciprocal %163 {approx = true} : vector<8x1xf32> -> vector<8x1xf32>
    %166 = arith.mulf %163, %165 : vector<8x1xf32>
    %cst_50 = arith.constant 2.000000e+00 : f32
    %167 = vector.broadcast %cst_50 : f32 to vector<8x1xf32>
    %168 = arith.subf %167, %166 : vector<8x1xf32>
    %169 = arith.mulf %165, %168 : vector<8x1xf32>
    %170 = vector.broadcast %169 : vector<8x1xf32> to vector<8x8xf32>
    %171 = arith.mulf %164, %170 : vector<8x8xf32>
    %172 = tpu.concatenate %108, %129, %150, %171 in 1 : vector<8x8xf32>, vector<8x8xf32>, vector<8x8xf32>, vector<8x8xf32> -> vector<8x32xf32>
    %c0_51 = arith.constant 0 : index
    %c32 = arith.constant 32 : index
    %173 = vector.load %arg2[%c0_51, %c32] : memref<8x64xf32, #tpu.memory_space<vmem>>, vector<8x32xf32>
    tpu.vector_store %arg2[%c0_51, %c32], %172 {strides = array<i32>} : memref<8x64xf32, #tpu.memory_space<vmem>>, vector<8x32xf32>,
    return
  }
  func.func @transform_0(%arg0: i32) -> (i32, i32) {
    %c0_i32 = arith.constant 0 : i32
    %c0_i32_0 = arith.constant 0 : i32
    return %c0_i32, %arg0 : i32, i32
  }
  func.func @transform_1(%arg0: i32) -> (i32, i32) {
    %c0_i32 = arith.constant 0 : i32
    %c0_i32_0 = arith.constant 0 : i32
    return %c0_i32, %arg0 : i32, i32
  }
}

module attributes {stable_mosaic.version = 11 : i64} {
  func.func @_ln_linear_kernel(%arg0: i32, %arg1: i32, %arg2: memref<16x32xf32, #tpu.memory_space<vmem>>, %arg3: memref<1x32xf32, #tpu.memory_space<vmem>>, %arg4: memref<1x32xf32, #tpu.memory_space<vmem>>, %arg5: memref<32x96xf32, #tpu.memory_space<vmem>>, %arg6: memref<1x96xf32, #tpu.memory_space<vmem>>, %arg7: memref<16x96xf32, #tpu.memory_space<vmem>>) attributes {dimension_semantics = [#tpu.dimension_semantics<parallel>, #tpu.dimension_semantics<parallel>], iteration_bounds = array<i64: 1, 1>, scalar_prefetch = 0 : i64, scratch_operands = 0 : i64, tpu.core_type = #tpu.core_type<tc>, window_params = [{transform_indices = @transform_0, window_bounds = array<i64: 16, 32>}, {pipeline_mode = #tpu.pipeline_mode<synchronous>, transform_indices = @transform_1, window_bounds = array<i64: 1, 32>}, {pipeline_mode = #tpu.pipeline_mode<synchronous>, transform_indices = @transform_2, window_bounds = array<i64: 1, 32>}, {transform_indices = @transform_3, window_bounds = array<i64: 32, 96>}, {transform_indices = @transform_4, window_bounds = array<i64: 1, 96>}, {transform_indices = @transform_5, window_bounds = array<i64: 16, 96>}]} {
    %c0 = arith.constant 0 : index
    %c0_0 = arith.constant 0 : index
    %0 = vector.load %arg2[%c0, %c0_0] : memref<16x32xf32, #tpu.memory_space<vmem>>, vector<16x32xf32>
    %cst = arith.constant dense<0.000000e+00> : vector<16xf32>
    %1 = vector.multi_reduction <add>, %0, %cst [1] : vector<16x32xf32> to vector<16xf32>
    %2 = vector.shape_cast %1 : vector<16xf32> to vector<16x1xf32>
    %cst_1 = arith.constant 3.200000e+01 : f32
    %3 = vector.broadcast %cst_1 : f32 to vector<16x1xf32>
    %4 = arith.divf %2, %3 : vector<16x1xf32>
    %5 = vector.broadcast %4 : vector<16x1xf32> to vector<16x32xf32>
    %6 = arith.subf %0, %5 : vector<16x32xf32>
    %7 = arith.mulf %6, %6 : vector<16x32xf32>
    %cst_2 = arith.constant dense<0.000000e+00> : vector<16xf32>
    %8 = vector.multi_reduction <add>, %7, %cst_2 [1] : vector<16x32xf32> to vector<16xf32>
    %9 = vector.shape_cast %8 : vector<16xf32> to vector<16x1xf32>
    %cst_3 = arith.constant 3.200000e+01 : f32
    %10 = vector.broadcast %cst_3 : f32 to vector<16x1xf32>
    %11 = arith.divf %9, %10 : vector<16x1xf32>
    %cst_4 = arith.constant 9.99999974E-6 : f32
    %12 = vector.broadcast %cst_4 : f32 to vector<16x1xf32>
    %13 = arith.addf %11, %12 : vector<16x1xf32>
    %14 = math.rsqrt %13 : vector<16x1xf32>
    %15 = vector.broadcast %14 : vector<16x1xf32> to vector<16x32xf32>
    %16 = arith.mulf %6, %15 : vector<16x32xf32>
    %c0_5 = arith.constant 0 : index
    %c0_6 = arith.constant 0 : index
    %17 = vector.load %arg3[%c0_5, %c0_6] : memref<1x32xf32, #tpu.memory_space<vmem>>, vector<1x32xf32>
    %18 = vector.broadcast %17 : vector<1x32xf32> to vector<16x32xf32>
    %19 = arith.mulf %16, %18 : vector<16x32xf32>
    %c0_7 = arith.constant 0 : index
    %c0_8 = arith.constant 0 : index
    %20 = vector.load %arg4[%c0_7, %c0_8] : memref<1x32xf32, #tpu.memory_space<vmem>>, vector<1x32xf32>
    %21 = vector.broadcast %20 : vector<1x32xf32> to vector<16x32xf32>
    %22 = arith.addf %19, %21 : vector<16x32xf32>
    %c0_9 = arith.constant 0 : index
    %c0_10 = arith.constant 0 : index
    %23 = vector.load %arg5[%c0_9, %c0_10] : memref<32x96xf32, #tpu.memory_space<vmem>>, vector<32x96xf32>
    %cst_11 = arith.constant dense<0.000000e+00> : vector<16x96xf32>
    %24 = tpu.matmul %22, %23, %cst_11 {dimension_numbers = #tpu.dot_dimension_numbers<[1], [0], [0], [1], [0, 0, 1, 1], [], []>} : vector<16x32xf32>, vector<32x96xf32>, vector<16x96xf32> -> vector<16x96xf32>
    %c0_12 = arith.constant 0 : index
    %c0_13 = arith.constant 0 : index
    %25 = vector.load %arg6[%c0_12, %c0_13] : memref<1x96xf32, #tpu.memory_space<vmem>>, vector<1x96xf32>
    %26 = vector.broadcast %25 : vector<1x96xf32> to vector<16x96xf32>
    %27 = arith.addf %24, %26 : vector<16x96xf32>
    %c0_14 = arith.constant 0 : index
    %c0_15 = arith.constant 0 : index
    %28 = vector.load %arg7[%c0_14, %c0_15] : memref<16x96xf32, #tpu.memory_space<vmem>>, vector<16x96xf32>
    tpu.vector_store %arg7[%c0_14, %c0_15], %27 {strides = array<i32>} : memref<16x96xf32, #tpu.memory_space<vmem>>, vector<16x96xf32>,
    return
  }
  func.func @transform_0(%arg0: i32, %arg1: i32) -> (i32, i32) {
    %c0_i32 = arith.constant 0 : i32
    %c0_i32_0 = arith.constant 0 : i32
    return %arg0, %c0_i32 : i32, i32
  }
  func.func @transform_1(%arg0: i32, %arg1: i32) -> (i32, i32) {
    %c0_i32 = arith.constant 0 : i32
    %c0_i32_0 = arith.constant 0 : i32
    %c0_i32_1 = arith.constant 0 : i32
    return %c0_i32, %c0_i32_0 : i32, i32
  }
  func.func @transform_2(%arg0: i32, %arg1: i32) -> (i32, i32) {
    %c0_i32 = arith.constant 0 : i32
    %c0_i32_0 = arith.constant 0 : i32
    %c0_i32_1 = arith.constant 0 : i32
    return %c0_i32, %c0_i32_0 : i32, i32
  }
  func.func @transform_3(%arg0: i32, %arg1: i32) -> (i32, i32) {
    %c0_i32 = arith.constant 0 : i32
    %c0_i32_0 = arith.constant 0 : i32
    return %c0_i32, %arg1 : i32, i32
  }
  func.func @transform_4(%arg0: i32, %arg1: i32) -> (i32, i32) {
    %c0_i32 = arith.constant 0 : i32
    %c0_i32_0 = arith.constant 0 : i32
    return %c0_i32, %arg1 : i32, i32
  }
  func.func @transform_5(%arg0: i32, %arg1: i32) -> (i32, i32) {
    %c0_i32 = arith.constant 0 : i32
    return %arg0, %arg1 : i32, i32
  }
}

module attributes {stable_mosaic.version = 11 : i64} {
  func.func @_attn_out_ffn_kernel(%arg0: i32, %arg1: memref<16x32xf32, #tpu.memory_space<vmem>>, %arg2: memref<16x32xf32, #tpu.memory_space<vmem>>, %arg3: memref<32x32xf32, #tpu.memory_space<vmem>>, %arg4: memref<1x32xf32, #tpu.memory_space<vmem>>, %arg5: memref<1x32xf32, #tpu.memory_space<vmem>>, %arg6: memref<1x32xf32, #tpu.memory_space<vmem>>, %arg7: memref<32x64xf32, #tpu.memory_space<vmem>>, %arg8: memref<1x64xf32, #tpu.memory_space<vmem>>, %arg9: memref<64x32xf32, #tpu.memory_space<vmem>>, %arg10: memref<1x32xf32, #tpu.memory_space<vmem>>, %arg11: memref<16x32xf32, #tpu.memory_space<vmem>>) attributes {dimension_semantics = [#tpu.dimension_semantics<parallel>], iteration_bounds = array<i64: 1>, scalar_prefetch = 0 : i64, scratch_operands = 0 : i64, tpu.core_type = #tpu.core_type<tc>, window_params = [{transform_indices = @transform_0, window_bounds = array<i64: 16, 32>}, {transform_indices = @transform_1, window_bounds = array<i64: 16, 32>}, {pipeline_mode = #tpu.pipeline_mode<synchronous>, transform_indices = @transform_2, window_bounds = array<i64: 32, 32>}, {pipeline_mode = #tpu.pipeline_mode<synchronous>, transform_indices = @transform_3, window_bounds = array<i64: 1, 32>}, {pipeline_mode = #tpu.pipeline_mode<synchronous>, transform_indices = @transform_4, window_bounds = array<i64: 1, 32>}, {pipeline_mode = #tpu.pipeline_mode<synchronous>, transform_indices = @transform_5, window_bounds = array<i64: 1, 32>}, {pipeline_mode = #tpu.pipeline_mode<synchronous>, transform_indices = @transform_6, window_bounds = array<i64: 32, 64>}, {pipeline_mode = #tpu.pipeline_mode<synchronous>, transform_indices = @transform_7, window_bounds = array<i64: 1, 64>}, {pipeline_mode = #tpu.pipeline_mode<synchronous>, transform_indices = @transform_8, window_bounds = array<i64: 64, 32>}, {pipeline_mode = #tpu.pipeline_mode<synchronous>, transform_indices = @transform_9, window_bounds = array<i64: 1, 32>}, {transform_indices = @transform_10, window_bounds = array<i64: 16, 32>}]} {
    %c0 = arith.constant 0 : index
    %c0_0 = arith.constant 0 : index
    %0 = vector.load %arg2[%c0, %c0_0] : memref<16x32xf32, #tpu.memory_space<vmem>>, vector<16x32xf32>
    %c0_1 = arith.constant 0 : index
    %c0_2 = arith.constant 0 : index
    %1 = vector.load %arg1[%c0_1, %c0_2] : memref<16x32xf32, #tpu.memory_space<vmem>>, vector<16x32xf32>
    %c0_3 = arith.constant 0 : index
    %c0_4 = arith.constant 0 : index
    %2 = vector.load %arg3[%c0_3, %c0_4] : memref<32x32xf32, #tpu.memory_space<vmem>>, vector<32x32xf32>
    %cst = arith.constant dense<0.000000e+00> : vector<16x32xf32>
    %3 = tpu.matmul %1, %2, %cst {dimension_numbers = #tpu.dot_dimension_numbers<[1], [0], [0], [1], [0, 0, 1, 1], [], []>} : vector<16x32xf32>, vector<32x32xf32>, vector<16x32xf32> -> vector<16x32xf32>
    %4 = arith.addf %0, %3 : vector<16x32xf32>
    %c0_5 = arith.constant 0 : index
    %c0_6 = arith.constant 0 : index
    %5 = vector.load %arg4[%c0_5, %c0_6] : memref<1x32xf32, #tpu.memory_space<vmem>>, vector<1x32xf32>
    %6 = vector.broadcast %5 : vector<1x32xf32> to vector<16x32xf32>
    %7 = arith.addf %4, %6 : vector<16x32xf32>
    %cst_7 = arith.constant dense<0.000000e+00> : vector<16xf32>
    %8 = vector.multi_reduction <add>, %7, %cst_7 [1] : vector<16x32xf32> to vector<16xf32>
    %9 = vector.shape_cast %8 : vector<16xf32> to vector<16x1xf32>
    %cst_8 = arith.constant 3.200000e+01 : f32
    %10 = vector.broadcast %cst_8 : f32 to vector<16x1xf32>
    %11 = arith.divf %9, %10 : vector<16x1xf32>
    %12 = vector.broadcast %11 : vector<16x1xf32> to vector<16x32xf32>
    %13 = arith.subf %7, %12 : vector<16x32xf32>
    %14 = arith.mulf %13, %13 : vector<16x32xf32>
    %cst_9 = arith.constant dense<0.000000e+00> : vector<16xf32>
    %15 = vector.multi_reduction <add>, %14, %cst_9 [1] : vector<16x32xf32> to vector<16xf32>
    %16 = vector.shape_cast %15 : vector<16xf32> to vector<16x1xf32>
    %cst_10 = arith.constant 3.200000e+01 : f32
    %17 = vector.broadcast %cst_10 : f32 to vector<16x1xf32>
    %18 = arith.divf %16, %17 : vector<16x1xf32>
    %cst_11 = arith.constant 9.99999974E-6 : f32
    %19 = vector.broadcast %cst_11 : f32 to vector<16x1xf32>
    %20 = arith.addf %18, %19 : vector<16x1xf32>
    %21 = math.rsqrt %20 : vector<16x1xf32>
    %22 = vector.broadcast %21 : vector<16x1xf32> to vector<16x32xf32>
    %23 = arith.mulf %13, %22 : vector<16x32xf32>
    %c0_12 = arith.constant 0 : index
    %c0_13 = arith.constant 0 : index
    %24 = vector.load %arg5[%c0_12, %c0_13] : memref<1x32xf32, #tpu.memory_space<vmem>>, vector<1x32xf32>
    %25 = vector.broadcast %24 : vector<1x32xf32> to vector<16x32xf32>
    %26 = arith.mulf %23, %25 : vector<16x32xf32>
    %c0_14 = arith.constant 0 : index
    %c0_15 = arith.constant 0 : index
    %27 = vector.load %arg6[%c0_14, %c0_15] : memref<1x32xf32, #tpu.memory_space<vmem>>, vector<1x32xf32>
    %28 = vector.broadcast %27 : vector<1x32xf32> to vector<16x32xf32>
    %29 = arith.addf %26, %28 : vector<16x32xf32>
    %c0_16 = arith.constant 0 : index
    %c0_17 = arith.constant 0 : index
    %30 = vector.load %arg7[%c0_16, %c0_17] : memref<32x64xf32, #tpu.memory_space<vmem>>, vector<32x64xf32>
    %cst_18 = arith.constant dense<0.000000e+00> : vector<16x64xf32>
    %31 = tpu.matmul %29, %30, %cst_18 {dimension_numbers = #tpu.dot_dimension_numbers<[1], [0], [0], [1], [0, 0, 1, 1], [], []>} : vector<16x32xf32>, vector<32x64xf32>, vector<16x64xf32> -> vector<16x64xf32>
    %c0_19 = arith.constant 0 : index
    %c0_20 = arith.constant 0 : index
    %32 = vector.load %arg8[%c0_19, %c0_20] : memref<1x64xf32, #tpu.memory_space<vmem>>, vector<1x64xf32>
    %33 = vector.broadcast %32 : vector<1x64xf32> to vector<16x64xf32>
    %34 = arith.addf %31, %33 : vector<16x64xf32>
    %cst_21 = arith.constant 0.000000e+00 : f32
    %35 = vector.broadcast %cst_21 : f32 to vector<16x64xf32>
    %36 = arith.maximumf %34, %35 : vector<16x64xf32>
    %c0_22 = arith.constant 0 : index
    %c0_23 = arith.constant 0 : index
    %37 = vector.load %arg9[%c0_22, %c0_23] : memref<64x32xf32, #tpu.memory_space<vmem>>, vector<64x32xf32>
    %cst_24 = arith.constant dense<0.000000e+00> : vector<16x32xf32>
    %38 = tpu.matmul %36, %37, %cst_24 {dimension_numbers = #tpu.dot_dimension_numbers<[1], [0], [0], [1], [0, 0, 1, 1], [], []>} : vector<16x64xf32>, vector<64x32xf32>, vector<16x32xf32> -> vector<16x32xf32>
    %39 = arith.addf %7, %38 : vector<16x32xf32>
    %c0_25 = arith.constant 0 : index
    %c0_26 = arith.constant 0 : index
    %40 = vector.load %arg10[%c0_25, %c0_26] : memref<1x32xf32, #tpu.memory_space<vmem>>, vector<1x32xf32>
    %41 = vector.broadcast %40 : vector<1x32xf32> to vector<16x32xf32>
    %42 = arith.addf %39, %41 : vector<16x32xf32>
    %c0_27 = arith.constant 0 : index
    %c0_28 = arith.constant 0 : index
    %43 = vector.load %arg11[%c0_27, %c0_28] : memref<16x32xf32, #tpu.memory_space<vmem>>, vector<16x32xf32>
    tpu.vector_store %arg11[%c0_27, %c0_28], %42 {strides = array<i32>} : memref<16x32xf32, #tpu.memory_space<vmem>>, vector<16x32xf32>,
    return
  }
  func.func @transform_0(%arg0: i32) -> (i32, i32) {
    %c0_i32 = arith.constant 0 : i32
    %c0_i32_0 = arith.constant 0 : i32
    return %arg0, %c0_i32 : i32, i32
  }
  func.func @transform_1(%arg0: i32) -> (i32, i32) {
    %c0_i32 = arith.constant 0 : i32
    %c0_i32_0 = arith.constant 0 : i32
    return %arg0, %c0_i32 : i32, i32
  }
  func.func @transform_2(%arg0: i32) -> (i32, i32) {
    %c0_i32 = arith.constant 0 : i32
    %c0_i32_0 = arith.constant 0 : i32
    %c0_i32_1 = arith.constant 0 : i32
    return %c0_i32, %c0_i32_0 : i32, i32
  }
  func.func @transform_3(%arg0: i32) -> (i32, i32) {
    %c0_i32 = arith.constant 0 : i32
    %c0_i32_0 = arith.constant 0 : i32
    %c0_i32_1 = arith.constant 0 : i32
    return %c0_i32, %c0_i32_0 : i32, i32
  }
  func.func @transform_4(%arg0: i32) -> (i32, i32) {
    %c0_i32 = arith.constant 0 : i32
    %c0_i32_0 = arith.constant 0 : i32
    %c0_i32_1 = arith.constant 0 : i32
    return %c0_i32, %c0_i32_0 : i32, i32
  }
  func.func @transform_5(%arg0: i32) -> (i32, i32) {
    %c0_i32 = arith.constant 0 : i32
    %c0_i32_0 = arith.constant 0 : i32
    %c0_i32_1 = arith.constant 0 : i32
    return %c0_i32, %c0_i32_0 : i32, i32
  }
  func.func @transform_6(%arg0: i32) -> (i32, i32) {
    %c0_i32 = arith.constant 0 : i32
    %c0_i32_0 = arith.constant 0 : i32
    %c0_i32_1 = arith.constant 0 : i32
    return %c0_i32, %c0_i32_0 : i32, i32
  }
  func.func @transform_7(%arg0: i32) -> (i32, i32) {
    %c0_i32 = arith.constant 0 : i32
    %c0_i32_0 = arith.constant 0 : i32
    %c0_i32_1 = arith.constant 0 : i32
    return %c0_i32, %c0_i32_0 : i32, i32
  }
  func.func @transform_8(%arg0: i32) -> (i32, i32) {
    %c0_i32 = arith.constant 0 : i32
    %c0_i32_0 = arith.constant 0 : i32
    %c0_i32_1 = arith.constant 0 : i32
    return %c0_i32, %c0_i32_0 : i32, i32
  }
  func.func @transform_9(%arg0: i32) -> (i32, i32) {
    %c0_i32 = arith.constant 0 : i32
    %c0_i32_0 = arith.constant 0 : i32
    %c0_i32_1 = arith.constant 0 : i32
    return %c0_i32, %c0_i32_0 : i32, i32
  }
  func.func @transform_10(%arg0: i32) -> (i32, i32) {
    %c0_i32 = arith.constant 0 : i32
    %c0_i32_0 = arith.constant 0 : i32
    return %arg0, %c0_i32 : i32, i32
  }
}

</mosaic_0001>

<llo_original>
// kernel: encoder_layer_forward.3
$region0: #{encoder_layer_forward.3}
  #allocation0 [shape = 'u32[]', space=smem, size = 0x4, offset = 0x4, fixed_abs, tag = 'smem constant byte address 0x4 - core index']
  #allocation1 [shape = 'u32[144,128]{1,0:T(1,128)}', space=vmem, size = 0x12000, scoped, tag = 'internal scratch']
  %s0 = inlined_call_operand.vmem [shape: f32[16,32], index: 0, kind: input, shape index: {}]
  %s1 = inlined_call_operand.vmem [shape: f32[1,32], index: 1, kind: input, shape index: {}]
  %s2 = inlined_call_operand.vmem [shape: f32[1,32], index: 2, kind: input, shape index: {}]
  %s3 = inlined_call_operand.hbm [shape: f32[32,96], index: 3, kind: input, shape index: {}]
  %s4 = inlined_call_operand.vmem [shape: f32[1,96], index: 4, kind: input, shape index: {}]
  %s5 = inlined_call_operand.vmem [shape: f32[16,96], index: 5, kind: output, shape index: {}]
  %s6 = sld [smem:[#allocation0]]
  $region34: #{encoder_layer_forward.3} parent=0
    _
  %s8 = ssub.s32 1, %s6
  %s9 = scalar_select 0, %s8, %s6
  $region1: #{encoder_layer_forward.3} parent=0
    #allocation2 [shape = 'u8[16384]{0}', space=vmem, size = 0x4000, scoped, tag = 'input window, operand 3, single buffered']
    #allocation3 [shape = 's32[1]{0}', space=sflag, size = 0x4, scoped, tag = 'scoped memory for encoder_layer_forward.3']
    %10 = vsyncpa [#allocation3], 0
    // Predicated region
    $region2: #{encoder_layer_forward.3} parent=1 // pred_check
      _
    $region3: #{encoder_layer_forward.3} parent=1 // pred_check_branch
      %12 = sbr.rel (0) target = $region5
    $region4: #{encoder_layer_forward.3} parent=1 // pred_region
      _
    $region5: #{encoder_layer_forward.3} parent=1 // pred_fallthru
      _
    // Predicated region
    $region6: #{encoder_layer_forward.3} parent=1 // pred_check
      _
    $region7: #{encoder_layer_forward.3} parent=1 // pred_check_branch
      %14 = sbr.rel (0) target = $region9
    $region8: #{encoder_layer_forward.3} parent=1 // pred_region
      _
    $region9: #{encoder_layer_forward.3} parent=1 // pred_fallthru
      _
    // Predicated region
    $region10: #{encoder_layer_forward.3} parent=1 // pred_check
      _
    $region11: #{encoder_layer_forward.3} parent=1 // pred_check_branch
      %16 = sbr.rel (0) target = $region13
    $region12: #{encoder_layer_forward.3} parent=1 // pred_region
      _
    $region13: #{encoder_layer_forward.3} parent=1 // pred_fallthru
      _
    // Predicated region
    $region14: #{encoder_layer_forward.3} parent=1 // pred_check
      _
    $region15: #{encoder_layer_forward.3} parent=1 // pred_check_branch
      %18 = sbr.rel (0) target = $region17
    $region16: #{encoder_layer_forward.3} parent=1 // pred_region
      %s20 = ssub.s32 512, 512
      %21 = vsyncadd [#allocation3], %s20
      %s22 = sshll.u32 [#allocation2], 4
      %s23 = int_to_ptr.vmem [resolvable:$true] %s22
      %28 = dma.hbm_to_vmem [thread:$0]  %s3, 512, %s23, [#allocation3], 128, 128, 8
    $region17: #{encoder_layer_forward.3} parent=1 // pred_fallthru
      _
    // Predicated region
    $region18: #{encoder_layer_forward.3} parent=1 // pred_check
      _
    $region19: #{encoder_layer_forward.3} parent=1 // pred_check_branch
      %30 = sbr.rel (0) target = $region21
    $region20: #{encoder_layer_forward.3} parent=1 // pred_region
      _
    $region21: #{encoder_layer_forward.3} parent=1 // pred_fallthru
      _
    // Predicated region
    $region22: #{encoder_layer_forward.3} parent=1 // pred_check
      _
    $region23: #{encoder_layer_forward.3} parent=1 // pred_check_branch
      %32 = sbr.rel (0) target = $region25
    $region24: #{encoder_layer_forward.3} parent=1 // pred_region
      %33 = dma.done [#allocation3], 512
    $region25: #{encoder_layer_forward.3} parent=1 // pred_fallthru
      _
    %v34 = vld [vmem:[%s0] sm:$0xff]
    %v35 = vld [vmem:[%s0 + $0x8] sm:$0xff]
    %vm36 = vcmask 261120
    %v37 = vsel %vm36, %v34, 0.0
    %38 = vadd.xlane.f32.xlu0 %v37
    %v39 = vpop.xlane.xlu0 %38
    %v40 = vsel %vm36, %v35, 0.0
    %41 = vadd.xlane.f32.xlu0 %v40
    %v42 = vpop.xlane.xlu0 %41
    %v43 = vrcp.pop 32.0
    %v44 = vmul.f32 %v39, %v43
    %v45 = vmul.f32 %v42, %v43
    %v46 = vsub.f32 %v34, %v44
    %v47 = vsub.f32 %v35, %v45
    %v48 = vmul.f32 %v46, %v46
    %v49 = vmul.f32 %v47, %v47
    %v50 = vsel %vm36, %v48, 0.0
    %51 = vadd.xlane.f32.xlu0 %v50
    %v52 = vpop.xlane.xlu0 %51
    %v53 = vsel %vm36, %v49, 0.0
    %54 = vadd.xlane.f32.xlu0 %v53
    %v55 = vpop.xlane.xlu0 %54
    %v56 = vmul.f32 %v52, %v43
    %v57 = vmul.f32 %v55, %v43
    %v58 = vadd.f32 %v56, 1e-05
    %v59 = vadd.f32 %v57, 1e-05
    %v60 = vrsqrt.pop %v58
    %v61 = vrsqrt.pop %v59
    %v62 = vmul.f32 %v46, %v60
    %v63 = vmul.f32 %v47, %v61
    %v64 = vld [vmem:[%s1] sm:$0x1]
    %v66 = vlaneseq
    %v67 = vshrl.u32 %v66, 7
    %v68 = vsub.s32 0, %v67
    %v69 = vrot.slane %v64, %v68
    %v71 = vmul.f32 %v62, %v69
    %v72 = vmul.f32 %v63, %v69
    %v73 = vld [vmem:[%s2] sm:$0x1]
    %v75 = vlaneseq
    %v76 = vshrl.u32 %v75, 7
    %v77 = vsub.s32 0, %v76
    %v78 = vrot.slane %v73, %v77
    %v80 = vadd.f32 %v71, %v78
    %v81 = vadd.f32 %v72, %v78
    %v82 = vld [vmem:[#allocation2] sm:$0xff]
    %v83 = vld [vmem:[#allocation2 + $0x8] sm:$0xff]
    %v84 = vld [vmem:[#allocation2 + $0x10] sm:$0xff]
    %v85 = vld [vmem:[#allocation2 + $0x18] sm:$0xff]
    %v86 = vld [vmem:[%s4] sm:$0x1]
    %v88 = vlaneseq
    %v89 = vshrl.u32 %v88, 7
    %v90 = vsub.s32 0, %v89
    %v91 = vrot.slane %v86, %v90
    %v94 = vsel %vm36, %v80, 0
    %v97 = vsel %vm36, %v81, 0
    %99 = vmatprep.subr.mxu0 0.0
    %100 = vmatpush1.msra.mxu0 %v82
    %101 = vmatprep.subr.mxu0 0.0
    %102 = vmatpush1.msra.mxu0 %v83
    %103 = vmatprep.subr.mxu0 0.0
    %104 = vmatpush1.msra.mxu0 %v84
    %105 = vmatprep.subr.mxu0 0.0
    %106 = vmatpush1.msra.mxu0 %v85
    %107 = vmatprep.subr.mxu0 0.0
    %108 = vmatpush1.msra.mxu0 0.0
    %109 = vmatprep.subr.mxu0 0.0
    %110 = vmatpush1.msra.mxu0 0.0
    %111 = vmatprep.subr.mxu0 0.0
    %112 = vmatpush1.msra.mxu0 0.0
    %113 = vmatprep.subr.mxu0 0.0
    %114 = vmatpush1.msra.mxu0 0.0
    %115 = vmatprep.subr.mxu0 0.0
    %116 = vmatpush1.msra.mxu0 0.0
    %117 = vmatprep.subr.mxu0 0.0
    %118 = vmatpush1.msra.mxu0 0.0
    %119 = vmatprep.subr.mxu0 0.0
    %120 = vmatpush1.msra.mxu0 0.0
    %121 = vmatprep.subr.mxu0 0.0
    %122 = vmatpush1.msra.mxu0 0.0
    %123 = vmatprep.subr.mxu0 0.0
    %124 = vmatpush1.msra.mxu0 0.0
    %125 = vmatprep.subr.mxu0 0.0
    %126 = vmatpush1.msra.mxu0 0.0
    %127 = vmatprep.subr.mxu0 0.0
    %128 = vmatpush1.msra.mxu0 0.0
    %129 = vmatprep.subr.mxu0 0.0
    %130 = vmatpush1.msra.mxu0 0.0
    %131 = vmatprep.subr.mxu0 0.0
    %132 = vmatpush1.msra.mxu0 0.0
    %133 = vmatprep.subr.mxu0 0.0
    %134 = vmatpush1.msra.mxu0 0.0
    %135 = vmatprep.subr.mxu0 0.0
    %136 = vmatpush1.msra.mxu0 0.0
    %137 = vmatprep.subr.mxu0 0.0
    %138 = vmatpush1.msra.mxu0 0.0
    %139 = vmatprep.subr.mxu0 0.0
    %140 = vmatpush1.msra.mxu0 0.0
    %141 = vmatprep.subr.mxu0 0.0
    %142 = vmatpush1.msra.mxu0 0.0
    %143 = vmatprep.subr.mxu0 0.0
    %144 = vmatpush1.msra.mxu0 0.0
    %145 = vmatprep.subr.mxu0 0.0
    %146 = vmatpush1.msra.mxu0 0.0
    %147 = vmatprep.subr.mxu0 0.0
    %148 = vmatpush1.msra.mxu0 0.0
    %149 = vmatprep.subr.mxu0 0.0
    %150 = vmatpush1.msra.mxu0 0.0
    %151 = vmatprep.subr.mxu0 0.0
    %152 = vmatpush1.msra.mxu0 0.0
    %153 = vmatprep.subr.mxu0 0.0
    %154 = vmatpush1.msra.mxu0 0.0
    %155 = vmatprep.subr.mxu0 0.0
    %156 = vmatpush1.msra.mxu0 0.0
    %157 = vmatprep.subr.mxu0 0.0
    %158 = vmatpush1.msra.mxu0 0.0
    %159 = vmatprep.subr.mxu0 0.0
    %160 = vmatpush1.msra.mxu0 0.0
    %161 = vmatprep.subr.mxu0 0.0
    %162 = vmatpush1.msra.mxu0 0.0
    %163 = vmatprep.mubr.f32.mxu0 0.0
    %164 = vmatmul.mubr.f32.gmra.mrb[0].mxu0 %v94
    %v165 = vpop.f32.mrb[0].mxu0
    %v166 = vadd.f32 %v91, %v165
    %v167 = vpop.f32.mrb[0].mxu0
    %168 = vmatprep.mubr.f32.mxu0 0.0
    %169 = vmatmul.mubr.f32.gmra.mrb[0].mxu0 %v97
    %v170 = vpop.f32.mrb[0].mxu0
    %v171 = vadd.f32 %v91, %v170
    %v172 = vpop.f32.mrb[0].mxu0
    %173 = vdwg.mxu0
    %vm174 = vcmask 785408
    %175 = vst.msk [vmem:[%s5] sm:$0xff] %vm174, %v166
    %176 = vst.msk [vmem:[%s5 + $0x8] sm:$0xff] %vm174, %v171
    // Predicated region
    $region26: #{encoder_layer_forward.3} parent=1 // pred_check
      _
    $region27: #{encoder_layer_forward.3} parent=1 // pred_check_branch
      %178 = sbr.rel (0) target = $region29
    $region28: #{encoder_layer_forward.3} parent=1 // pred_region
      _
    $region29: #{encoder_layer_forward.3} parent=1 // pred_fallthru
      _
    // Predicated region
    $region30: #{encoder_layer_forward.3} parent=1 // pred_check
      _
    $region31: #{encoder_layer_forward.3} parent=1 // pred_check_branch
      %180 = sbr.rel (0) target = $region33
    $region32: #{encoder_layer_forward.3} parent=1 // pred_region
      _
    $region33: #{encoder_layer_forward.3} parent=1 // pred_fallthru
      _
    %181 = vsyncpa [#allocation3], 1

// kernel: encoder_layer_forward.4
$region0: #{encoder_layer_forward.4}
  #allocation0 [shape = 'u32[]', space=smem, size = 0x4, offset = 0x4, fixed_abs, tag = 'smem constant byte address 0x4 - core index']
  #allocation1 [shape = 'u32[144,128]{1,0:T(1,128)}', space=vmem, size = 0x12000, scoped, tag = 'internal scratch']
  %s0 = inlined_call_operand.vmem [shape: f32[8,192], index: 0, kind: input, shape index: {}]
  %s1 = inlined_call_operand.vmem [shape: f32[8,64], index: 1, kind: output, shape index: {}]
  %s2 = sld [smem:[#allocation0]]
  $region14: #{encoder_layer_forward.4} parent=0
    _
  %s4 = ssub.s32 1, %s2
  %s5 = scalar_select 0, %s4, %s2
  // Predicated region
  $region2: #{encoder_layer_forward.4} parent=0 // pred_check
    _
  $region3: #{encoder_layer_forward.4} parent=0 // pred_check_branch
    %7 = sbr.rel (0) target = $region5
  $region4: #{encoder_layer_forward.4} parent=0 // pred_region
    _
  $region5: #{encoder_layer_forward.4} parent=0 // pred_fallthru
    _
  %v8 = vld [vmem:[%s0] sm:$0xff]
  %v9 = vmul.f32 %v8, 0.35355338
  %11 = vrot.lane.b32.xlu0 %v8, 96
  %v12 = vpop.permute.xlu0 %11
  %vm13 = vcmask 64512
  %v15 = vsel %vm13, %v9, 0
  %v17 = vsel %vm13, %v12, 0
  %19 = vmatprep.subr.mxu0 0.0
  %20 = vmatpush1.xpose.msra.mxu0 %v17
  %21 = vmatprep.subr.mxu0 0.0
  %22 = vmatpush1.xpose.msra.mxu0 0.0
  %23 = vmatprep.subr.mxu0 0.0
  %24 = vmatpush1.xpose.msra.mxu0 0.0
  %25 = vmatprep.subr.mxu0 0.0
  %26 = vmatpush1.xpose.msra.mxu0 0.0
  %27 = vmatprep.subr.mxu0 0.0
  %28 = vmatpush1.xpose.msra.mxu0 0.0
  %29 = vmatprep.subr.mxu0 0.0
  %30 = vmatpush1.xpose.msra.mxu0 0.0
  %31 = vmatprep.subr.mxu0 0.0
  %32 = vmatpush1.xpose.msra.mxu0 0.0
  %33 = vmatprep.subr.mxu0 0.0
  %34 = vmatpush1.xpose.msra.mxu0 0.0
  %35 = vmatprep.subr.mxu0 0.0
  %36 = vmatpush1.xpose.msra.mxu0 0.0
  %37 = vmatprep.subr.mxu0 0.0
  %38 = vmatpush1.xpose.msra.mxu0 0.0
  %39 = vmatprep.subr.mxu0 0.0
  %40 = vmatpush1.xpose.msra.mxu0 0.0
  %41 = vmatprep.subr.mxu0 0.0
  %42 = vmatpush1.xpose.msra.mxu0 0.0
  %43 = vmatprep.subr.mxu0 0.0
  %44 = vmatpush1.xpose.msra.mxu0 0.0
  %45 = vmatprep.subr.mxu0 0.0
  %46 = vmatpush1.xpose.msra.mxu0 0.0
  %47 = vmatprep.subr.mxu0 0.0
  %48 = vmatpush1.xpose.msra.mxu0 0.0
  %49 = vmatprep.subr.mxu0 0.0
  %50 = vmatpush1.xpose.msra.mxu0 0.0
  %51 = vmatprep.subr.mxu0 0.0
  %52 = vmatpush1.xpose.msra.mxu0 0.0
  %53 = vmatprep.subr.mxu0 0.0
  %54 = vmatpush1.xpose.msra.mxu0 0.0
  %55 = vmatprep.subr.mxu0 0.0
  %56 = vmatpush1.xpose.msra.mxu0 0.0
  %57 = vmatprep.subr.mxu0 0.0
  %58 = vmatpush1.xpose.msra.mxu0 0.0
  %59 = vmatprep.subr.mxu0 0.0
  %60 = vmatpush1.xpose.msra.mxu0 0.0
  %61 = vmatprep.subr.mxu0 0.0
  %62 = vmatpush1.xpose.msra.mxu0 0.0
  %63 = vmatprep.subr.mxu0 0.0
  %64 = vmatpush1.xpose.msra.mxu0 0.0
  %65 = vmatprep.subr.mxu0 0.0
  %66 = vmatpush1.xpose.msra.mxu0 0.0
  %67 = vmatprep.subr.mxu0 0.0
  %68 = vmatpush1.xpose.msra.mxu0 0.0
  %69 = vmatprep.subr.mxu0 0.0
  %70 = vmatpush1.xpose.msra.mxu0 0.0
  %71 = vmatprep.subr.mxu0 0.0
  %72 = vmatpush1.xpose.msra.mxu0 0.0
  %73 = vmatprep.subr.mxu0 0.0
  %74 = vmatpush1.xpose.msra.mxu0 0.0
  %75 = vmatprep.subr.mxu0 0.0
  %76 = vmatpush1.xpose.msra.mxu0 0.0
  %77 = vmatprep.subr.mxu0 0.0
  %78 = vmatpush1.xpose.msra.mxu0 0.0
  %79 = vmatprep.subr.mxu0 0.0
  %80 = vmatpush1.xpose.msra.mxu0 0.0
  %81 = vmatprep.subr.mxu0 0.0
  %82 = vmatpush1.xpose.msra.mxu0 0.0
  %83 = vmatprep.mubr.f32.mxu0 0.0
  %84 = vmatmul.mubr.f32.gmra.mrb[0].mxu0 %v15
  %v85 = vpop.f32.mrb[0].mxu0
  %v86 = vadd.f32 0.0, %v85
  %v87 = vpop.f32.mrb[0].mxu0
  %88 = vdwg.mxu0
  %v89 = vsel %vm13, %v86, -inf
  %90 = vmax.xlane.f32.xlu0 %v89
  %v91 = vpop.xlane.xlu0 %90
  %v92 = vsub.f32 %v86, %v91
  %v93 = vmul.f32 %v92, 1.442695
  %v94 = vpow.pop %v93
  %v95 = vsel %vm13, %v94, 0.0
  %96 = vadd.xlane.f32.xlu0 %v95
  %v97 = vpop.xlane.xlu0 %96
  %98 = vrot.lane.b32.xlu0 %v8, 64
  %v99 = vpop.permute.xlu0 %98
  %v102 = vsel %vm13, %v94, 0
  %104 = vmatprep.subr.mxu0 0.0
  %105 = vmatpush1.msra.mxu0 %v99
  %106 = vmatprep.subr.mxu0 0.0
  %107 = vmatpush1.msra.mxu0 0.0
  %108 = vmatprep.subr.mxu0 0.0
  %109 = vmatpush1.msra.mxu0 0.0
  %110 = vmatprep.subr.mxu0 0.0
  %111 = vmatpush1.msra.mxu0 0.0
  %112 = vmatprep.subr.mxu0 0.0
  %113 = vmatpush1.msra.mxu0 0.0
  %114 = vmatprep.subr.mxu0 0.0
  %115 = vmatpush1.msra.mxu0 0.0
  %116 = vmatprep.subr.mxu0 0.0
  %117 = vmatpush1.msra.mxu0 0.0
  %118 = vmatprep.subr.mxu0 0.0
  %119 = vmatpush1.msra.mxu0 0.0
  %120 = vmatprep.subr.mxu0 0.0
  %121 = vmatpush1.msra.mxu0 0.0
  %122 = vmatprep.subr.mxu0 0.0
  %123 = vmatpush1.msra.mxu0 0.0
  %124 = vmatprep.subr.mxu0 0.0
  %125 = vmatpush1.msra.mxu0 0.0
  %126 = vmatprep.subr.mxu0 0.0
  %127 = vmatpush1.msra.mxu0 0.0
  %128 = vmatprep.subr.mxu0 0.0
  %129 = vmatpush1.msra.mxu0 0.0
  %130 = vmatprep.subr.mxu0 0.0
  %131 = vmatpush1.msra.mxu0 0.0
  %132 = vmatprep.subr.mxu0 0.0
  %133 = vmatpush1.msra.mxu0 0.0
  %134 = vmatprep.subr.mxu0 0.0
  %135 = vmatpush1.msra.mxu0 0.0
  %136 = vmatprep.subr.mxu0 0.0
  %137 = vmatpush1.msra.mxu0 0.0
  %138 = vmatprep.subr.mxu0 0.0
  %139 = vmatpush1.msra.mxu0 0.0
  %140 = vmatprep.subr.mxu0 0.0
  %141 = vmatpush1.msra.mxu0 0.0
  %142 = vmatprep.subr.mxu0 0.0
  %143 = vmatpush1.msra.mxu0 0.0
  %144 = vmatprep.subr.mxu0 0.0
  %145 = vmatpush1.msra.mxu0 0.0
  %146 = vmatprep.subr.mxu0 0.0
  %147 = vmatpush1.msra.mxu0 0.0
  %148 = vmatprep.subr.mxu0 0.0
  %149 = vmatpush1.msra.mxu0 0.0
  %150 = vmatprep.subr.mxu0 0.0
  %151 = vmatpush1.msra.mxu0 0.0
  %152 = vmatprep.subr.mxu0 0.0
  %153 = vmatpush1.msra.mxu0 0.0
  %154 = vmatprep.subr.mxu0 0.0
  %155 = vmatpush1.msra.mxu0 0.0
  %156 = vmatprep.subr.mxu0 0.0
  %157 = vmatpush1.msra.mxu0 0.0
  %158 = vmatprep.subr.mxu0 0.0
  %159 = vmatpush1.msra.mxu0 0.0
  %160 = vmatprep.subr.mxu0 0.0
  %161 = vmatpush1.msra.mxu0 0.0
  %162 = vmatprep.subr.mxu0 0.0
  %163 = vmatpush1.msra.mxu0 0.0
  %164 = vmatprep.subr.mxu0 0.0
  %165 = vmatpush1.msra.mxu0 0.0
  %166 = vmatprep.subr.mxu0 0.0
  %167 = vmatpush1.msra.mxu0 0.0
  %168 = vmatprep.mubr.f32.mxu0 0.0
  %169 = vmatmul.mubr.f32.gmra.mrb[0].mxu0 %v102
  %v170 = vpop.f32.mrb[0].mxu0
  %v171 = vadd.f32 0.0, %v170
  %v172 = vpop.f32.mrb[0].mxu0
  %173 = vdwg.mxu0
  %v174 = vrcp.pop %v97
  %v175 = vmul.f32 %v97, %v174
  %v176 = vsub.f32 2.0, %v175
  %v177 = vmul.f32 %v174, %v176
  %v178 = vmul.f32 %v171, %v177
  %179 = vrot.lane.b32.xlu0 %v9, 120
  %v180 = vpop.permute.xlu0 %179
  %181 = vrot.lane.b32.xlu0 %v8, 88
  %v182 = vpop.permute.xlu0 %181
  %v183 = vsel %vm13, %v180, 0
  %v185 = vsel %vm13, %v182, 0
  %187 = vmatprep.subr.mxu0 0.0
  %188 = vmatpush1.xpose.msra.mxu0 %v185
  %189 = vmatprep.subr.mxu0 0.0
  %190 = vmatpush1.xpose.msra.mxu0 0.0
  %191 = vmatprep.subr.mxu0 0.0
  %192 = vmatpush1.xpose.msra.mxu0 0.0
  %193 = vmatprep.subr.mxu0 0.0
  %194 = vmatpush1.xpose.msra.mxu0 0.0
  %195 = vmatprep.subr.mxu0 0.0
  %196 = vmatpush1.xpose.msra.mxu0 0.0
  %197 = vmatprep.subr.mxu0 0.0
  %198 = vmatpush1.xpose.msra.mxu0 0.0
  %199 = vmatprep.subr.mxu0 0.0
  %200 = vmatpush1.xpose.msra.mxu0 0.0
  %201 = vmatprep.subr.mxu0 0.0
  %202 = vmatpush1.xpose.msra.mxu0 0.0
  %203 = vmatprep.subr.mxu0 0.0
  %204 = vmatpush1.xpose.msra.mxu0 0.0
  %205 = vmatprep.subr.mxu0 0.0
  %206 = vmatpush1.xpose.msra.mxu0 0.0
  %207 = vmatprep.subr.mxu0 0.0
  %208 = vmatpush1.xpose.msra.mxu0 0.0
  %209 = vmatprep.subr.mxu0 0.0
  %210 = vmatpush1.xpose.msra.mxu0 0.0
  %211 = vmatprep.subr.mxu0 0.0
  %212 = vmatpush1.xpose.msra.mxu0 0.0
  %213 = vmatprep.subr.mxu0 0.0
  %214 = vmatpush1.xpose.msra.mxu0 0.0
  %215 = vmatprep.subr.mxu0 0.0
  %216 = vmatpush1.xpose.msra.mxu0 0.0
  %217 = vmatprep.subr.mxu0 0.0
  %218 = vmatpush1.xpose.msra.mxu0 0.0
  %219 = vmatprep.subr.mxu0 0.0
  %220 = vmatpush1.xpose.msra.mxu0 0.0
  %221 = vmatprep.subr.mxu0 0.0
  %222 = vmatpush1.xpose.msra.mxu0 0.0
  %223 = vmatprep.subr.mxu0 0.0
  %224 = vmatpush1.xpose.msra.mxu0 0.0
  %225 = vmatprep.subr.mxu0 0.0
  %226 = vmatpush1.xpose.msra.mxu0 0.0
  %227 = vmatprep.subr.mxu0 0.0
  %228 = vmatpush1.xpose.msra.mxu0 0.0
  %229 = vmatprep.subr.mxu0 0.0
  %230 = vmatpush1.xpose.msra.mxu0 0.0
  %231 = vmatprep.subr.mxu0 0.0
  %232 = vmatpush1.xpose.msra.mxu0 0.0
  %233 = vmatprep.subr.mxu0 0.0
  %234 = vmatpush1.xpose.msra.mxu0 0.0
  %235 = vmatprep.subr.mxu0 0.0
  %236 = vmatpush1.xpose.msra.mxu0 0.0
  %237 = vmatprep.subr.mxu0 0.0
  %238 = vmatpush1.xpose.msra.mxu0 0.0
  %239 = vmatprep.subr.mxu0 0.0
  %240 = vmatpush1.xpose.msra.mxu0 0.0
  %241 = vmatprep.subr.mxu0 0.0
  %242 = vmatpush1.xpose.msra.mxu0 0.0
  %243 = vmatprep.subr.mxu0 0.0
  %244 = vmatpush1.xpose.msra.mxu0 0.0
  %245 = vmatprep.subr.mxu0 0.0
  %246 = vmatpush1.xpose.msra.mxu0 0.0
  %247 = vmatprep.subr.mxu0 0.0
  %248 = vmatpush1.xpose.msra.mxu0 0.0
  %249 = vmatprep.subr.mxu0 0.0
  %250 = vmatpush1.xpose.msra.mxu0 0.0
  %251 = vmatprep.mubr.f32.mxu0 0.0
  %252 = vmatmul.mubr.f32.gmra.mrb[0].mxu0 %v183
  %v253 = vpop.f32.mrb[0].mxu0
  %v254 = vadd.f32 0.0, %v253
  %v255 = vpop.f32.mrb[0].mxu0
  %256 = vdwg.mxu0
  %v257 = vsel %vm13, %v254, -inf
  %258 = vmax.xlane.f32.xlu0 %v257
  %v259 = vpop.xlane.xlu0 %258
  %v260 = vsub.f32 %v254, %v259
  %v261 = vmul.f32 %v260, 1.442695
  %v262 = vpow.pop %v261
  %v263 = vsel %vm13, %v262, 0.0
  %264 = vadd.xlane.f32.xlu0 %v263
  %v265 = vpop.xlane.xlu0 %264
  %266 = vrot.lane.b32.xlu0 %v8, 56
  %v267 = vpop.permute.xlu0 %266
  %v270 = vsel %vm13, %v262, 0
  %272 = vmatprep.subr.mxu0 0.0
  %273 = vmatpush1.msra.mxu0 %v267
  %274 = vmatprep.subr.mxu0 0.0
  %275 = vmatpush1.msra.mxu0 0.0
  %276 = vmatprep.subr.mxu0 0.0
  %277 = vmatpush1.msra.mxu0 0.0
  %278 = vmatprep.subr.mxu0 0.0
  %279 = vmatpush1.msra.mxu0 0.0
  %280 = vmatprep.subr.mxu0 0.0
  %281 = vmatpush1.msra.mxu0 0.0
  %282 = vmatprep.subr.mxu0 0.0
  %283 = vmatpush1.msra.mxu0 0.0
  %284 = vmatprep.subr.mxu0 0.0
  %285 = vmatpush1.msra.mxu0 0.0
  %286 = vmatprep.subr.mxu0 0.0
  %287 = vmatpush1.msra.mxu0 0.0
  %288 = vmatprep.subr.mxu0 0.0
  %289 = vmatpush1.msra.mxu0 0.0
  %290 = vmatprep.subr.mxu0 0.0
  %291 = vmatpush1.msra.mxu0 0.0
  %292 = vmatprep.subr.mxu0 0.0
  %293 = vmatpush1.msra.mxu0 0.0
  %294 = vmatprep.subr.mxu0 0.0
  %295 = vmatpush1.msra.mxu0 0.0
  %296 = vmatprep.subr.mxu0 0.0
  %297 = vmatpush1.msra.mxu0 0.0
  %298 = vmatprep.subr.mxu0 0.0
  %299 = vmatpush1.msra.mxu0 0.0
  %300 = vmatprep.subr.mxu0 0.0
  %301 = vmatpush1.msra.mxu0 0.0
  %302 = vmatprep.subr.mxu0 0.0
  %303 = vmatpush1.msra.mxu0 0.0
  %304 = vmatprep.subr.mxu0 0.0
  %305 = vmatpush1.msra.mxu0 0.0
  %306 = vmatprep.subr.mxu0 0.0
  %307 = vmatpush1.msra.mxu0 0.0
  %308 = vmatprep.subr.mxu0 0.0
  %309 = vmatpush1.msra.mxu0 0.0
  %310 = vmatprep.subr.mxu0 0.0
  %311 = vmatpush1.msra.mxu0 0.0
  %312 = vmatprep.subr.mxu0 0.0
  %313 = vmatpush1.msra.mxu0 0.0
  %314 = vmatprep.subr.mxu0 0.0
  %315 = vmatpush1.msra.mxu0 0.0
  %316 = vmatprep.subr.mxu0 0.0
  %317 = vmatpush1.msra.mxu0 0.0
  %318 = vmatprep.subr.mxu0 0.0
  %319 = vmatpush1.msra.mxu0 0.0
  %320 = vmatprep.subr.mxu0 0.0
  %321 = vmatpush1.msra.mxu0 0.0
  %322 = vmatprep.subr.mxu0 0.0
  %323 = vmatpush1.msra.mxu0 0.0
  %324 = vmatprep.subr.mxu0 0.0
  %325 = vmatpush1.msra.mxu0 0.0
  %326 = vmatprep.subr.mxu0 0.0
  %327 = vmatpush1.msra.mxu0 0.0
  %328 = vmatprep.subr.mxu0 0.0
  %329 = vmatpush1.msra.mxu0 0.0
  %330 = vmatprep.subr.mxu0 0.0
  %331 = vmatpush1.msra.mxu0 0.0
  %332 = vmatprep.subr.mxu0 0.0
  %333 = vmatpush1.msra.mxu0 0.0
  %334 = vmatprep.subr.mxu0 0.0
  %335 = vmatpush1.msra.mxu0 0.0
  %336 = vmatprep.mubr.f32.mxu0 0.0
  %337 = vmatmul.mubr.f32.gmra.mrb[0].mxu0 %v270
  %v338 = vpop.f32.mrb[0].mxu0
  %v339 = vadd.f32 0.0, %v338
  %v340 = vpop.f32.mrb[0].mxu0
  %341 = vdwg.mxu0
  %v342 = vrcp.pop %v265
  %v343 = vmul.f32 %v265, %v342
  %v344 = vsub.f32 2.0, %v343
  %v345 = vmul.f32 %v342, %v344
  %v346 = vmul.f32 %v339, %v345
  %347 = vrot.lane.b32.xlu0 %v9, 112
  %v348 = vpop.permute.xlu0 %347
  %349 = vrot.lane.b32.xlu0 %v8, 80
  %v350 = vpop.permute.xlu0 %349
  %v351 = vsel %vm13, %v348, 0
  %v353 = vsel %vm13, %v350, 0
  %355 = vmatprep.subr.mxu0 0.0
  %356 = vmatpush1.xpose.msra.mxu0 %v353
  %357 = vmatprep.subr.mxu0 0.0
  %358 = vmatpush1.xpose.msra.mxu0 0.0
  %359 = vmatprep.subr.mxu0 0.0
  %360 = vmatpush1.xpose.msra.mxu0 0.0
  %361 = vmatprep.subr.mxu0 0.0
  %362 = vmatpush1.xpose.msra.mxu0 0.0
  %363 = vmatprep.subr.mxu0 0.0
  %364 = vmatpush1.xpose.msra.mxu0 0.0
  %365 = vmatprep.subr.mxu0 0.0
  %366 = vmatpush1.xpose.msra.mxu0 0.0
  %367 = vmatprep.subr.mxu0 0.0
  %368 = vmatpush1.xpose.msra.mxu0 0.0
  %369 = vmatprep.subr.mxu0 0.0
  %370 = vmatpush1.xpose.msra.mxu0 0.0
  %371 = vmatprep.subr.mxu0 0.0
  %372 = vmatpush1.xpose.msra.mxu0 0.0
  %373 = vmatprep.subr.mxu0 0.0
  %374 = vmatpush1.xpose.msra.mxu0 0.0
  %375 = vmatprep.subr.mxu0 0.0
  %376 = vmatpush1.xpose.msra.mxu0 0.0
  %377 = vmatprep.subr.mxu0 0.0
  %378 = vmatpush1.xpose.msra.mxu0 0.0
  %379 = vmatprep.subr.mxu0 0.0
  %380 = vmatpush1.xpose.msra.mxu0 0.0
  %381 = vmatprep.subr.mxu0 0.0
  %382 = vmatpush1.xpose.msra.mxu0 0.0
  %383 = vmatprep.subr.mxu0 0.0
  %384 = vmatpush1.xpose.msra.mxu0 0.0
  %385 = vmatprep.subr.mxu0 0.0
  %386 = vmatpush1.xpose.msra.mxu0 0.0
  %387 = vmatprep.subr.mxu0 0.0
  %388 = vmatpush1.xpose.msra.mxu0 0.0
  %389 = vmatprep.subr.mxu0 0.0
  %390 = vmatpush1.xpose.msra.mxu0 0.0
  %391 = vmatprep.subr.mxu0 0.0
  %392 = vmatpush1.xpose.msra.mxu0 0.0
  %393 = vmatprep.subr.mxu0 0.0
  %394 = vmatpush1.xpose.msra.mxu0 0.0
  %395 = vmatprep.subr.mxu0 0.0
  %396 = vmatpush1.xpose.msra.mxu0 0.0
  %397 = vmatprep.subr.mxu0 0.0
  %398 = vmatpush1.xpose.msra.mxu0 0.0
  %399 = vmatprep.subr.mxu0 0.0
  %400 = vmatpush1.xpose.msra.mxu0 0.0
  %401 = vmatprep.subr.mxu0 0.0
  %402 = vmatpush1.xpose.msra.mxu0 0.0
  %403 = vmatprep.subr.mxu0 0.0
  %404 = vmatpush1.xpose.msra.mxu0 0.0
  %405 = vmatprep.subr.mxu0 0.0
  %406 = vmatpush1.xpose.msra.mxu0 0.0
  %407 = vmatprep.subr.mxu0 0.0
  %408 = vmatpush1.xpose.msra.mxu0 0.0
  %409 = vmatprep.subr.mxu0 0.0
  %410 = vmatpush1.xpose.msra.mxu0 0.0
  %411 = vmatprep.subr.mxu0 0.0
  %412 = vmatpush1.xpose.msra.mxu0 0.0
  %413 = vmatprep.subr.mxu0 0.0
  %414 = vmatpush1.xpose.msra.mxu0 0.0
  %415 = vmatprep.subr.mxu0 0.0
  %416 = vmatpush1.xpose.msra.mxu0 0.0
  %417 = vmatprep.subr.mxu0 0.0
  %418 = vmatpush1.xpose.msra.mxu0 0.0
  %419 = vmatprep.mubr.f32.mxu0 0.0
  %420 = vmatmul.mubr.f32.gmra.mrb[0].mxu0 %v351
  %v421 = vpop.f32.mrb[0].mxu0
  %v422 = vadd.f32 0.0, %v421
  %v423 = vpop.f32.mrb[0].mxu0
  %424 = vdwg.mxu0
  %v425 = vsel %vm13, %v422, -inf
  %426 = vmax.xlane.f32.xlu0 %v425
  %v427 = vpop.xlane.xlu0 %426
  %v428 = vsub.f32 %v422, %v427
  %v429 = vmul.f32 %v428, 1.442695
  %v430 = vpow.pop %v429
  %v431 = vsel %vm13, %v430, 0.0
  %432 = vadd.xlane.f32.xlu0 %v431
  %v433 = vpop.xlane.xlu0 %432
  %434 = vrot.lane.b32.xlu0 %v8, 48
  %v435 = vpop.permute.xlu0 %434
  %v438 = vsel %vm13, %v430, 0
  %440 = vmatprep.subr.mxu0 0.0
  %441 = vmatpush1.msra.mxu0 %v435
  %442 = vmatprep.subr.mxu0 0.0
  %443 = vmatpush1.msra.mxu0 0.0
  %444 = vmatprep.subr.mxu0 0.0
  %445 = vmatpush1.msra.mxu0 0.0
  %446 = vmatprep.subr.mxu0 0.0
  %447 = vmatpush1.msra.mxu0 0.0
  %448 = vmatprep.subr.mxu0 0.0
  %449 = vmatpush1.msra.mxu0 0.0
  %450 = vmatprep.subr.mxu0 0.0
  %451 = vmatpush1.msra.mxu0 0.0
  %452 = vmatprep.subr.mxu0 0.0
  %453 = vmatpush1.msra.mxu0 0.0
  %454 = vmatprep.subr.mxu0 0.0
  %455 = vmatpush1.msra.mxu0 0.0
  %456 = vmatprep.subr.mxu0 0.0
  %457 = vmatpush1.msra.mxu0 0.0
  %458 = vmatprep.subr.mxu0 0.0
  %459 = vmatpush1.msra.mxu0 0.0
  %460 = vmatprep.subr.mxu0 0.0
  %461 = vmatpush1.msra.mxu0 0.0
  %462 = vmatprep.subr.mxu0 0.0
  %463 = vmatpush1.msra.mxu0 0.0
  %464 = vmatprep.subr.mxu0 0.0
  %465 = vmatpush1.msra.mxu0 0.0
  %466 = vmatprep.subr.mxu0 0.0
  %467 = vmatpush1.msra.mxu0 0.0
  %468 = vmatprep.subr.mxu0 0.0
  %469 = vmatpush1.msra.mxu0 0.0
  %470 = vmatprep.subr.mxu0 0.0
  %471 = vmatpush1.msra.mxu0 0.0
  %472 = vmatprep.subr.mxu0 0.0
  %473 = vmatpush1.msra.mxu0 0.0
  %474 = vmatprep.subr.mxu0 0.0
  %475 = vmatpush1.msra.mxu0 0.0
  %476 = vmatprep.subr.mxu0 0.0
  %477 = vmatpush1.msra.mxu0 0.0
  %478 = vmatprep.subr.mxu0 0.0
  %479 = vmatpush1.msra.mxu0 0.0
  %480 = vmatprep.subr.mxu0 0.0
  %481 = vmatpush1.msra.mxu0 0.0
  %482 = vmatprep.subr.mxu0 0.0
  %483 = vmatpush1.msra.mxu0 0.0
  %484 = vmatprep.subr.mxu0 0.0
  %485 = vmatpush1.msra.mxu0 0.0
  %486 = vmatprep.subr.mxu0 0.0
  %487 = vmatpush1.msra.mxu0 0.0
  %488 = vmatprep.subr.mxu0 0.0
  %489 = vmatpush1.msra.mxu0 0.0
  %490 = vmatprep.subr.mxu0 0.0
  %491 = vmatpush1.msra.mxu0 0.0
  %492 = vmatprep.subr.mxu0 0.0
  %493 = vmatpush1.msra.mxu0 0.0
  %494 = vmatprep.subr.mxu0 0.0
  %495 = vmatpush1.msra.mxu0 0.0
  %496 = vmatprep.subr.mxu0 0.0
  %497 = vmatpush1.msra.mxu0 0.0
  %498 = vmatprep.subr.mxu0 0.0
  %499 = vmatpush1.msra.mxu0 0.0
  %500 = vmatprep.subr.mxu0 0.0
  %501 = vmatpush1.msra.mxu0 0.0
  %502 = vmatprep.subr.mxu0 0.0
  %503 = vmatpush1.msra.mxu0 0.0
  %504 = vmatprep.mubr.f32.mxu0 0.0
  %505 = vmatmul.mubr.f32.gmra.mrb[0].mxu0 %v438
  %v506 = vpop.f32.mrb[0].mxu0
  %v507 = vadd.f32 0.0, %v506
  %v508 = vpop.f32.mrb[0].mxu0
  %509 = vdwg.mxu0
  %v510 = vrcp.pop %v433
  %v511 = vmul.f32 %v433, %v510
  %v512 = vsub.f32 2.0, %v511
  %v513 = vmul.f32 %v510, %v512
  %v514 = vmul.f32 %v507, %v513
  %515 = vrot.lane.b32.xlu0 %v9, 104
  %v516 = vpop.permute.xlu0 %515
  %517 = vrot.lane.b32.xlu0 %v8, 72
  %v518 = vpop.permute.xlu0 %517
  %v519 = vsel %vm13, %v516, 0
  %v521 = vsel %vm13, %v518, 0
  %523 = vmatprep.subr.mxu0 0.0
  %524 = vmatpush1.xpose.msra.mxu0 %v521
  %525 = vmatprep.subr.mxu0 0.0
  %526 = vmatpush1.xpose.msra.mxu0 0.0
  %527 = vmatprep.subr.mxu0 0.0
  %528 = vmatpush1.xpose.msra.mxu0 0.0
  %529 = vmatprep.subr.mxu0 0.0
  %530 = vmatpush1.xpose.msra.mxu0 0.0
  %531 = vmatprep.subr.mxu0 0.0
  %532 = vmatpush1.xpose.msra.mxu0 0.0
  %533 = vmatprep.subr.mxu0 0.0
  %534 = vmatpush1.xpose.msra.mxu0 0.0
  %535 = vmatprep.subr.mxu0 0.0
  %536 = vmatpush1.xpose.msra.mxu0 0.0
  %537 = vmatprep.subr.mxu0 0.0
  %538 = vmatpush1.xpose.msra.mxu0 0.0
  %539 = vmatprep.subr.mxu0 0.0
  %540 = vmatpush1.xpose.msra.mxu0 0.0
  %541 = vmatprep.subr.mxu0 0.0
  %542 = vmatpush1.xpose.msra.mxu0 0.0
  %543 = vmatprep.subr.mxu0 0.0
  %544 = vmatpush1.xpose.msra.mxu0 0.0
  %545 = vmatprep.subr.mxu0 0.0
  %546 = vmatpush1.xpose.msra.mxu0 0.0
  %547 = vmatprep.subr.mxu0 0.0
  %548 = vmatpush1.xpose.msra.mxu0 0.0
  %549 = vmatprep.subr.mxu0 0.0
  %550 = vmatpush1.xpose.msra.mxu0 0.0
  %551 = vmatprep.subr.mxu0 0.0
  %552 = vmatpush1.xpose.msra.mxu0 0.0
  %553 = vmatprep.subr.mxu0 0.0
  %554 = vmatpush1.xpose.msra.mxu0 0.0
  %555 = vmatprep.subr.mxu0 0.0
  %556 = vmatpush1.xpose.msra.mxu0 0.0
  %557 = vmatprep.subr.mxu0 0.0
  %558 = vmatpush1.xpose.msra.mxu0 0.0
  %559 = vmatprep.subr.mxu0 0.0
  %560 = vmatpush1.xpose.msra.mxu0 0.0
  %561 = vmatprep.subr.mxu0 0.0
  %562 = vmatpush1.xpose.msra.mxu0 0.0
  %563 = vmatprep.subr.mxu0 0.0
  %564 = vmatpush1.xpose.msra.mxu0 0.0
  %565 = vmatprep.subr.mxu0 0.0
  %566 = vmatpush1.xpose.msra.mxu0 0.0
  %567 = vmatprep.subr.mxu0 0.0
  %568 = vmatpush1.xpose.msra.mxu0 0.0
  %569 = vmatprep.subr.mxu0 0.0
  %570 = vmatpush1.xpose.msra.mxu0 0.0
  %571 = vmatprep.subr.mxu0 0.0
  %572 = vmatpush1.xpose.msra.mxu0 0.0
  %573 = vmatprep.subr.mxu0 0.0
  %574 = vmatpush1.xpose.msra.mxu0 0.0
  %575 = vmatprep.subr.mxu0 0.0
  %576 = vmatpush1.xpose.msra.mxu0 0.0
  %577 = vmatprep.subr.mxu0 0.0
  %578 = vmatpush1.xpose.msra.mxu0 0.0
  %579 = vmatprep.subr.mxu0 0.0
  %580 = vmatpush1.xpose.msra.mxu0 0.0
  %581 = vmatprep.subr.mxu0 0.0
  %582 = vmatpush1.xpose.msra.mxu0 0.0
  %583 = vmatprep.subr.mxu0 0.0
  %584 = vmatpush1.xpose.msra.mxu0 0.0
  %585 = vmatprep.subr.mxu0 0.0
  %586 = vmatpush1.xpose.msra.mxu0 0.0
  %587 = vmatprep.mubr.f32.mxu0 0.0
  %588 = vmatmul.mubr.f32.gmra.mrb[0].mxu0 %v519
  %v589 = vpop.f32.mrb[0].mxu0
  %v590 = vadd.f32 0.0, %v589
  %v591 = vpop.f32.mrb[0].mxu0
  %592 = vdwg.mxu0
  %v593 = vsel %vm13, %v590, -inf
  %594 = vmax.xlane.f32.xlu0 %v593
  %v595 = vpop.xlane.xlu0 %594
  %v596 = vsub.f32 %v590, %v595
  %v597 = vmul.f32 %v596, 1.442695
  %v598 = vpow.pop %v597
  %v599 = vsel %vm13, %v598, 0.0
  %600 = vadd.xlane.f32.xlu0 %v599
  %v601 = vpop.xlane.xlu0 %600
  %602 = vrot.lane.b32.xlu0 %v8, 40
  %v603 = vpop.permute.xlu0 %602
  %v606 = vsel %vm13, %v598, 0
  %608 = vmatprep.subr.mxu0 0.0
  %609 = vmatpush1.msra.mxu0 %v603
  %610 = vmatprep.subr.mxu0 0.0
  %611 = vmatpush1.msra.mxu0 0.0
  %612 = vmatprep.subr.mxu0 0.0
  %613 = vmatpush1.msra.mxu0 0.0
  %614 = vmatprep.subr.mxu0 0.0
  %615 = vmatpush1.msra.mxu0 0.0
  %616 = vmatprep.subr.mxu0 0.0
  %617 = vmatpush1.msra.mxu0 0.0
  %618 = vmatprep.subr.mxu0 0.0
  %619 = vmatpush1.msra.mxu0 0.0
  %620 = vmatprep.subr.mxu0 0.0
  %621 = vmatpush1.msra.mxu0 0.0
  %622 = vmatprep.subr.mxu0 0.0
  %623 = vmatpush1.msra.mxu0 0.0
  %624 = vmatprep.subr.mxu0 0.0
  %625 = vmatpush1.msra.mxu0 0.0
  %626 = vmatprep.subr.mxu0 0.0
  %627 = vmatpush1.msra.mxu0 0.0
  %628 = vmatprep.subr.mxu0 0.0
  %629 = vmatpush1.msra.mxu0 0.0
  %630 = vmatprep.subr.mxu0 0.0
  %631 = vmatpush1.msra.mxu0 0.0
  %632 = vmatprep.subr.mxu0 0.0
  %633 = vmatpush1.msra.mxu0 0.0
  %634 = vmatprep.subr.mxu0 0.0
  %635 = vmatpush1.msra.mxu0 0.0
  %636 = vmatprep.subr.mxu0 0.0
  %637 = vmatpush1.msra.mxu0 0.0
  %638 = vmatprep.subr.mxu0 0.0
  %639 = vmatpush1.msra.mxu0 0.0
  %640 = vmatprep.subr.mxu0 0.0
  %641 = vmatpush1.msra.mxu0 0.0
  %642 = vmatprep.subr.mxu0 0.0
  %643 = vmatpush1.msra.mxu0 0.0
  %644 = vmatprep.subr.mxu0 0.0
  %645 = vmatpush1.msra.mxu0 0.0
  %646 = vmatprep.subr.mxu0 0.0
  %647 = vmatpush1.msra.mxu0 0.0
  %648 = vmatprep.subr.mxu0 0.0
  %649 = vmatpush1.msra.mxu0 0.0
  %650 = vmatprep.subr.mxu0 0.0
  %651 = vmatpush1.msra.mxu0 0.0
  %652 = vmatprep.subr.mxu0 0.0
  %653 = vmatpush1.msra.mxu0 0.0
  %654 = vmatprep.subr.mxu0 0.0
  %655 = vmatpush1.msra.mxu0 0.0
  %656 = vmatprep.subr.mxu0 0.0
  %657 = vmatpush1.msra.mxu0 0.0
  %658 = vmatprep.subr.mxu0 0.0
  %659 = vmatpush1.msra.mxu0 0.0
  %660 = vmatprep.subr.mxu0 0.0
  %661 = vmatpush1.msra.mxu0 0.0
  %662 = vmatprep.subr.mxu0 0.0
  %663 = vmatpush1.msra.mxu0 0.0
  %664 = vmatprep.subr.mxu0 0.0
  %665 = vmatpush1.msra.mxu0 0.0
  %666 = vmatprep.subr.mxu0 0.0
  %667 = vmatpush1.msra.mxu0 0.0
  %668 = vmatprep.subr.mxu0 0.0
  %669 = vmatpush1.msra.mxu0 0.0
  %670 = vmatprep.subr.mxu0 0.0
  %671 = vmatpush1.msra.mxu0 0.0
  %672 = vmatprep.mubr.f32.mxu0 0.0
  %673 = vmatmul.mubr.f32.gmra.mrb[0].mxu0 %v606
  %v674 = vpop.f32.mrb[0].mxu0
  %v675 = vadd.f32 0.0, %v674
  %v676 = vpop.f32.mrb[0].mxu0
  %677 = vdwg.mxu0
  %v678 = vrcp.pop %v601
  %v679 = vmul.f32 %v601, %v678
  %v680 = vsub.f32 2.0, %v679
  %v681 = vmul.f32 %v678, %v680
  %v682 = vmul.f32 %v675, %v681
  %684 = vrot.lane.b32.xlu0 %v346, 8
  %v685 = vpop.permute.xlu0 %684
  %688 = vrot.lane.b32.xlu0 %v514, 16
  %v689 = vpop.permute.xlu0 %688
  %692 = vrot.lane.b32.xlu0 %v682, 24
  %v693 = vpop.permute.xlu0 %692
  %v695 = vsel %vm13, %v178, %v685
  %vm696 = vcmask 130048
  %v697 = vsel %vm696, %v695, %v689
  %vm698 = vcmask 195584
  %v699 = vsel %vm698, %v697, %v693
  %vm700 = vcmask 261120
  %701 = vst.msk [vmem:[%s1] sm:$0xff] %vm700, %v699
  %v702 = vld [vmem:[%s0] sm:$0xff]
  %v703 = vld [vmem:[%s0 + $0x8] sm:$0xff]
  %v704 = vmul.f32 %v702, 0.35355338
  %706 = vrot.lane.b32.xlu0 %v704, 32
  %v707 = vpop.permute.xlu0 %706
  %v708 = vsel %vm13, %v707, 0
  %v711 = vsel %vm13, %v703, 0
  %713 = vmatprep.subr.mxu0 0.0
  %714 = vmatpush1.xpose.msra.mxu0 %v711
  %715 = vmatprep.subr.mxu0 0.0
  %716 = vmatpush1.xpose.msra.mxu0 0.0
  %717 = vmatprep.subr.mxu0 0.0
  %718 = vmatpush1.xpose.msra.mxu0 0.0
  %719 = vmatprep.subr.mxu0 0.0
  %720 = vmatpush1.xpose.msra.mxu0 0.0
  %721 = vmatprep.subr.mxu0 0.0
  %722 = vmatpush1.xpose.msra.mxu0 0.0
  %723 = vmatprep.subr.mxu0 0.0
  %724 = vmatpush1.xpose.msra.mxu0 0.0
  %725 = vmatprep.subr.mxu0 0.0
  %726 = vmatpush1.xpose.msra.mxu0 0.0
  %727 = vmatprep.subr.mxu0 0.0
  %728 = vmatpush1.xpose.msra.mxu0 0.0
  %729 = vmatprep.subr.mxu0 0.0
  %730 = vmatpush1.xpose.msra.mxu0 0.0
  %731 = vmatprep.subr.mxu0 0.0
  %732 = vmatpush1.xpose.msra.mxu0 0.0
  %733 = vmatprep.subr.mxu0 0.0
  %734 = vmatpush1.xpose.msra.mxu0 0.0
  %735 = vmatprep.subr.mxu0 0.0
  %736 = vmatpush1.xpose.msra.mxu0 0.0
  %737 = vmatprep.subr.mxu0 0.0
  %738 = vmatpush1.xpose.msra.mxu0 0.0
  %739 = vmatprep.subr.mxu0 0.0
  %740 = vmatpush1.xpose.msra.mxu0 0.0
  %741 = vmatprep.subr.mxu0 0.0
  %742 = vmatpush1.xpose.msra.mxu0 0.0
  %743 = vmatprep.subr.mxu0 0.0
  %744 = vmatpush1.xpose.msra.mxu0 0.0
  %745 = vmatprep.subr.mxu0 0.0
  %746 = vmatpush1.xpose.msra.mxu0 0.0
  %747 = vmatprep.subr.mxu0 0.0
  %748 = vmatpush1.xpose.msra.mxu0 0.0
  %749 = vmatprep.subr.mxu0 0.0
  %750 = vmatpush1.xpose.msra.mxu0 0.0
  %751 = vmatprep.subr.mxu0 0.0
  %752 = vmatpush1.xpose.msra.mxu0 0.0
  %753 = vmatprep.subr.mxu0 0.0
  %754 = vmatpush1.xpose.msra.mxu0 0.0
  %755 = vmatprep.subr.mxu0 0.0
  %756 = vmatpush1.xpose.msra.mxu0 0.0
  %757 = vmatprep.subr.mxu0 0.0
  %758 = vmatpush1.xpose.msra.mxu0 0.0
  %759 = vmatprep.subr.mxu0 0.0
  %760 = vmatpush1.xpose.msra.mxu0 0.0
  %761 = vmatprep.subr.mxu0 0.0
  %762 = vmatpush1.xpose.msra.mxu0 0.0
  %763 = vmatprep.subr.mxu0 0.0
  %764 = vmatpush1.xpose.msra.mxu0 0.0
  %765 = vmatprep.subr.mxu0 0.0
  %766 = vmatpush1.xpose.msra.mxu0 0.0
  %767 = vmatprep.subr.mxu0 0.0
  %768 = vmatpush1.xpose.msra.mxu0 0.0
  %769 = vmatprep.subr.mxu0 0.0
  %770 = vmatpush1.xpose.msra.mxu0 0.0
  %771 = vmatprep.subr.mxu0 0.0
  %772 = vmatpush1.xpose.msra.mxu0 0.0
  %773 = vmatprep.subr.mxu0 0.0
  %774 = vmatpush1.xpose.msra.mxu0 0.0
  %775 = vmatprep.subr.mxu0 0.0
  %776 = vmatpush1.xpose.msra.mxu0 0.0
  %777 = vmatprep.mubr.f32.mxu0 0.0
  %778 = vmatmul.mubr.f32.gmra.mrb[0].mxu0 %v708
  %v779 = vpop.f32.mrb[0].mxu0
  %v780 = vadd.f32 0.0, %v779
  %v781 = vpop.f32.mrb[0].mxu0
  %782 = vdwg.mxu0
  %v783 = vsel %vm13, %v780, -inf
  %784 = vmax.xlane.f32.xlu0 %v783
  %v785 = vpop.xlane.xlu0 %784
  %v786 = vsub.f32 %v780, %v785
  %v787 = vmul.f32 %v786, 1.442695
  %v788 = vpow.pop %v787
  %v789 = vsel %vm13, %v788, 0.0
  %790 = vadd.xlane.f32.xlu0 %v789
  %v791 = vpop.xlane.xlu0 %790
  %792 = vrot.lane.b32.xlu0 %v703, 96
  %v793 = vpop.permute.xlu0 %792
  %v796 = vsel %vm13, %v788, 0
  %798 = vmatprep.subr.mxu0 0.0
  %799 = vmatpush1.msra.mxu0 %v793
  %800 = vmatprep.subr.mxu0 0.0
  %801 = vmatpush1.msra.mxu0 0.0
  %802 = vmatprep.subr.mxu0 0.0
  %803 = vmatpush1.msra.mxu0 0.0
  %804 = vmatprep.subr.mxu0 0.0
  %805 = vmatpush1.msra.mxu0 0.0
  %806 = vmatprep.subr.mxu0 0.0
  %807 = vmatpush1.msra.mxu0 0.0
  %808 = vmatprep.subr.mxu0 0.0
  %809 = vmatpush1.msra.mxu0 0.0
  %810 = vmatprep.subr.mxu0 0.0
  %811 = vmatpush1.msra.mxu0 0.0
  %812 = vmatprep.subr.mxu0 0.0
  %813 = vmatpush1.msra.mxu0 0.0
  %814 = vmatprep.subr.mxu0 0.0
  %815 = vmatpush1.msra.mxu0 0.0
  %816 = vmatprep.subr.mxu0 0.0
  %817 = vmatpush1.msra.mxu0 0.0
  %818 = vmatprep.subr.mxu0 0.0
  %819 = vmatpush1.msra.mxu0 0.0
  %820 = vmatprep.subr.mxu0 0.0
  %821 = vmatpush1.msra.mxu0 0.0
  %822 = vmatprep.subr.mxu0 0.0
  %823 = vmatpush1.msra.mxu0 0.0
  %824 = vmatprep.subr.mxu0 0.0
  %825 = vmatpush1.msra.mxu0 0.0
  %826 = vmatprep.subr.mxu0 0.0
  %827 = vmatpush1.msra.mxu0 0.0
  %828 = vmatprep.subr.mxu0 0.0
  %829 = vmatpush1.msra.mxu0 0.0
  %830 = vmatprep.subr.mxu0 0.0
  %831 = vmatpush1.msra.mxu0 0.0
  %832 = vmatprep.subr.mxu0 0.0
  %833 = vmatpush1.msra.mxu0 0.0
  %834 = vmatprep.subr.mxu0 0.0
  %835 = vmatpush1.msra.mxu0 0.0
  %836 = vmatprep.subr.mxu0 0.0
  %837 = vmatpush1.msra.mxu0 0.0
  %838 = vmatprep.subr.mxu0 0.0
  %839 = vmatpush1.msra.mxu0 0.0
  %840 = vmatprep.subr.mxu0 0.0
  %841 = vmatpush1.msra.mxu0 0.0
  %842 = vmatprep.subr.mxu0 0.0
  %843 = vmatpush1.msra.mxu0 0.0
  %844 = vmatprep.subr.mxu0 0.0
  %845 = vmatpush1.msra.mxu0 0.0
  %846 = vmatprep.subr.mxu0 0.0
  %847 = vmatpush1.msra.mxu0 0.0
  %848 = vmatprep.subr.mxu0 0.0
  %849 = vmatpush1.msra.mxu0 0.0
  %850 = vmatprep.subr.mxu0 0.0
  %851 = vmatpush1.msra.mxu0 0.0
  %852 = vmatprep.subr.mxu0 0.0
  %853 = vmatpush1.msra.mxu0 0.0
  %854 = vmatprep.subr.mxu0 0.0
  %855 = vmatpush1.msra.mxu0 0.0
  %856 = vmatprep.subr.mxu0 0.0
  %857 = vmatpush1.msra.mxu0 0.0
  %858 = vmatprep.subr.mxu0 0.0
  %859 = vmatpush1.msra.mxu0 0.0
  %860 = vmatprep.subr.mxu0 0.0
  %861 = vmatpush1.msra.mxu0 0.0
  %862 = vmatprep.mubr.f32.mxu0 0.0
  %863 = vmatmul.mubr.f32.gmra.mrb[0].mxu0 %v796
  %v864 = vpop.f32.mrb[0].mxu0
  %v865 = vadd.f32 0.0, %v864
  %v866 = vpop.f32.mrb[0].mxu0
  %867 = vdwg.mxu0
  %v868 = vrcp.pop %v791
  %v869 = vmul.f32 %v791, %v868
  %v870 = vsub.f32 2.0, %v869
  %v871 = vmul.f32 %v868, %v870
  %v872 = vmul.f32 %v865, %v871
  %873 = vrot.lane.b32.xlu0 %v704, 24
  %v874 = vpop.permute.xlu0 %873
  %875 = vrot.lane.b32.xlu0 %v703, 120
  %v876 = vpop.permute.xlu0 %875
  %v877 = vsel %vm13, %v874, 0
  %v879 = vsel %vm13, %v876, 0
  %881 = vmatprep.subr.mxu0 0.0
  %882 = vmatpush1.xpose.msra.mxu0 %v879
  %883 = vmatprep.subr.mxu0 0.0
  %884 = vmatpush1.xpose.msra.mxu0 0.0
  %885 = vmatprep.subr.mxu0 0.0
  %886 = vmatpush1.xpose.msra.mxu0 0.0
  %887 = vmatprep.subr.mxu0 0.0
  %888 = vmatpush1.xpose.msra.mxu0 0.0
  %889 = vmatprep.subr.mxu0 0.0
  %890 = vmatpush1.xpose.msra.mxu0 0.0
  %891 = vmatprep.subr.mxu0 0.0
  %892 = vmatpush1.xpose.msra.mxu0 0.0
  %893 = vmatprep.subr.mxu0 0.0
  %894 = vmatpush1.xpose.msra.mxu0 0.0
  %895 = vmatprep.subr.mxu0 0.0
  %896 = vmatpush1.xpose.msra.mxu0 0.0
  %897 = vmatprep.subr.mxu0 0.0
  %898 = vmatpush1.xpose.msra.mxu0 0.0
  %899 = vmatprep.subr.mxu0 0.0
  %900 = vmatpush1.xpose.msra.mxu0 0.0
  %901 = vmatprep.subr.mxu0 0.0
  %902 = vmatpush1.xpose.msra.mxu0 0.0
  %903 = vmatprep.subr.mxu0 0.0
  %904 = vmatpush1.xpose.msra.mxu0 0.0
  %905 = vmatprep.subr.mxu0 0.0
  %906 = vmatpush1.xpose.msra.mxu0 0.0
  %907 = vmatprep.subr.mxu0 0.0
  %908 = vmatpush1.xpose.msra.mxu0 0.0
  %909 = vmatprep.subr.mxu0 0.0
  %910 = vmatpush1.xpose.msra.mxu0 0.0
  %911 = vmatprep.subr.mxu0 0.0
  %912 = vmatpush1.xpose.msra.mxu0 0.0
  %913 = vmatprep.subr.mxu0 0.0
  %914 = vmatpush1.xpose.msra.mxu0 0.0
  %915 = vmatprep.subr.mxu0 0.0
  %916 = vmatpush1.xpose.msra.mxu0 0.0
  %917 = vmatprep.subr.mxu0 0.0
  %918 = vmatpush1.xpose.msra.mxu0 0.0
  %919 = vmatprep.subr.mxu0 0.0
  %920 = vmatpush1.xpose.msra.mxu0 0.0
  %921 = vmatprep.subr.mxu0 0.0
  %922 = vmatpush1.xpose.msra.mxu0 0.0
  %923 = vmatprep.subr.mxu0 0.0
  %924 = vmatpush1.xpose.msra.mxu0 0.0
  %925 = vmatprep.subr.mxu0 0.0
  %926 = vmatpush1.xpose.msra.mxu0 0.0
  %927 = vmatprep.subr.mxu0 0.0
  %928 = vmatpush1.xpose.msra.mxu0 0.0
  %929 = vmatprep.subr.mxu0 0.0
  %930 = vmatpush1.xpose.msra.mxu0 0.0
  %931 = vmatprep.subr.mxu0 0.0
  %932 = vmatpush1.xpose.msra.mxu0 0.0
  %933 = vmatprep.subr.mxu0 0.0
  %934 = vmatpush1.xpose.msra.mxu0 0.0
  %935 = vmatprep.subr.mxu0 0.0
  %936 = vmatpush1.xpose.msra.mxu0 0.0
  %937 = vmatprep.subr.mxu0 0.0
  %938 = vmatpush1.xpose.msra.mxu0 0.0
  %939 = vmatprep.subr.mxu0 0.0
  %940 = vmatpush1.xpose.msra.mxu0 0.0
  %941 = vmatprep.subr.mxu0 0.0
  %942 = vmatpush1.xpose.msra.mxu0 0.0
  %943 = vmatprep.subr.mxu0 0.0
  %944 = vmatpush1.xpose.msra.mxu0 0.0
  %945 = vmatprep.mubr.f32.mxu0 0.0
  %946 = vmatmul.mubr.f32.gmra.mrb[0].mxu0 %v877
  %v947 = vpop.f32.mrb[0].mxu0
  %v948 = vadd.f32 0.0, %v947
  %v949 = vpop.f32.mrb[0].mxu0
  %950 = vdwg.mxu0
  %v951 = vsel %vm13, %v948, -inf
  %952 = vmax.xlane.f32.xlu0 %v951
  %v953 = vpop.xlane.xlu0 %952
  %v954 = vsub.f32 %v948, %v953
  %v955 = vmul.f32 %v954, 1.442695
  %v956 = vpow.pop %v955
  %v957 = vsel %vm13, %v956, 0.0
  %958 = vadd.xlane.f32.xlu0 %v957
  %v959 = vpop.xlane.xlu0 %958
  %960 = vrot.lane.b32.xlu0 %v703, 88
  %v961 = vpop.permute.xlu0 %960
  %v964 = vsel %vm13, %v956, 0
  %966 = vmatprep.subr.mxu0 0.0
  %967 = vmatpush1.msra.mxu0 %v961
  %968 = vmatprep.subr.mxu0 0.0
  %969 = vmatpush1.msra.mxu0 0.0
  %970 = vmatprep.subr.mxu0 0.0
  %971 = vmatpush1.msra.mxu0 0.0
  %972 = vmatprep.subr.mxu0 0.0
  %973 = vmatpush1.msra.mxu0 0.0
  %974 = vmatprep.subr.mxu0 0.0
  %975 = vmatpush1.msra.mxu0 0.0
  %976 = vmatprep.subr.mxu0 0.0
  %977 = vmatpush1.msra.mxu0 0.0
  %978 = vmatprep.subr.mxu0 0.0
  %979 = vmatpush1.msra.mxu0 0.0
  %980 = vmatprep.subr.mxu0 0.0
  %981 = vmatpush1.msra.mxu0 0.0
  %982 = vmatprep.subr.mxu0 0.0
  %983 = vmatpush1.msra.mxu0 0.0
  %984 = vmatprep.subr.mxu0 0.0
  %985 = vmatpush1.msra.mxu0 0.0
  %986 = vmatprep.subr.mxu0 0.0
  %987 = vmatpush1.msra.mxu0 0.0
  %988 = vmatprep.subr.mxu0 0.0
  %989 = vmatpush1.msra.mxu0 0.0
  %990 = vmatprep.subr.mxu0 0.0
  %991 = vmatpush1.msra.mxu0 0.0
  %992 = vmatprep.subr.mxu0 0.0
  %993 = vmatpush1.msra.mxu0 0.0
  %994 = vmatprep.subr.mxu0 0.0
  %995 = vmatpush1.msra.mxu0 0.0
  %996 = vmatprep.subr.mxu0 0.0
  %997 = vmatpush1.msra.mxu0 0.0
  %998 = vmatprep.subr.mxu0 0.0
  %999 = vmatpush1.msra.mxu0 0.0
  %1000 = vmatprep.subr.mxu0 0.0
  %1001 = vmatpush1.msra.mxu0 0.0
  %1002 = vmatprep.subr.mxu0 0.0
  %1003 = vmatpush1.msra.mxu0 0.0
  %1004 = vmatprep.subr.mxu0 0.0
  %1005 = vmatpush1.msra.mxu0 0.0
  %1006 = vmatprep.subr.mxu0 0.0
  %1007 = vmatpush1.msra.mxu0 0.0
  %1008 = vmatprep.subr.mxu0 0.0
  %1009 = vmatpush1.msra.mxu0 0.0
  %1010 = vmatprep.subr.mxu0 0.0
  %1011 = vmatpush1.msra.mxu0 0.0
  %1012 = vmatprep.subr.mxu0 0.0
  %1013 = vmatpush1.msra.mxu0 0.0
  %1014 = vmatprep.subr.mxu0 0.0
  %1015 = vmatpush1.msra.mxu0 0.0
  %1016 = vmatprep.subr.mxu0 0.0
  %1017 = vmatpush1.msra.mxu0 0.0
  %1018 = vmatprep.subr.mxu0 0.0
  %1019 = vmatpush1.msra.mxu0 0.0
  %1020 = vmatprep.subr.mxu0 0.0
  %1021 = vmatpush1.msra.mxu0 0.0
  %1022 = vmatprep.subr.mxu0 0.0
  %1023 = vmatpush1.msra.mxu0 0.0
  %1024 = vmatprep.subr.mxu0 0.0
  %1025 = vmatpush1.msra.mxu0 0.0
  %1026 = vmatprep.subr.mxu0 0.0
  %1027 = vmatpush1.msra.mxu0 0.0
  %1028 = vmatprep.subr.mxu0 0.0
  %1029 = vmatpush1.msra.mxu0 0.0
  %1030 = vmatprep.mubr.f32.mxu0 0.0
  %1031 = vmatmul.mubr.f32.gmra.mrb[0].mxu0 %v964
  %v1032 = vpop.f32.mrb[0].mxu0
  %v1033 = vadd.f32 0.0, %v1032
  %v1034 = vpop.f32.mrb[0].mxu0
  %1035 = vdwg.mxu0
  %v1036 = vrcp.pop %v959
  %v1037 = vmul.f32 %v959, %v1036
  %v1038 = vsub.f32 2.0, %v1037
  %v1039 = vmul.f32 %v1036, %v1038
  %v1040 = vmul.f32 %v1033, %v1039
  %1041 = vrot.lane.b32.xlu0 %v704, 16
  %v1042 = vpop.permute.xlu0 %1041
  %1043 = vrot.lane.b32.xlu0 %v703, 112
  %v1044 = vpop.permute.xlu0 %1043
  %v1045 = vsel %vm13, %v1042, 0
  %v1047 = vsel %vm13, %v1044, 0
  %1049 = vmatprep.subr.mxu0 0.0
  %1050 = vmatpush1.xpose.msra.mxu0 %v1047
  %1051 = vmatprep.subr.mxu0 0.0
  %1052 = vmatpush1.xpose.msra.mxu0 0.0
  %1053 = vmatprep.subr.mxu0 0.0
  %1054 = vmatpush1.xpose.msra.mxu0 0.0
  %1055 = vmatprep.subr.mxu0 0.0
  %1056 = vmatpush1.xpose.msra.mxu0 0.0
  %1057 = vmatprep.subr.mxu0 0.0
  %1058 = vmatpush1.xpose.msra.mxu0 0.0
  %1059 = vmatprep.subr.mxu0 0.0
  %1060 = vmatpush1.xpose.msra.mxu0 0.0
  %1061 = vmatprep.subr.mxu0 0.0
  %1062 = vmatpush1.xpose.msra.mxu0 0.0
  %1063 = vmatprep.subr.mxu0 0.0
  %1064 = vmatpush1.xpose.msra.mxu0 0.0
  %1065 = vmatprep.subr.mxu0 0.0
  %1066 = vmatpush1.xpose.msra.mxu0 0.0
  %1067 = vmatprep.subr.mxu0 0.0
  %1068 = vmatpush1.xpose.msra.mxu0 0.0
  %1069 = vmatprep.subr.mxu0 0.0
  %1070 = vmatpush1.xpose.msra.mxu0 0.0
  %1071 = vmatprep.subr.mxu0 0.0
  %1072 = vmatpush1.xpose.msra.mxu0 0.0
  %1073 = vmatprep.subr.mxu0 0.0
  %1074 = vmatpush1.xpose.msra.mxu0 0.0
  %1075 = vmatprep.subr.mxu0 0.0
  %1076 = vmatpush1.xpose.msra.mxu0 0.0
  %1077 = vmatprep.subr.mxu0 0.0
  %1078 = vmatpush1.xpose.msra.mxu0 0.0
  %1079 = vmatprep.subr.mxu0 0.0
  %1080 = vmatpush1.xpose.msra.mxu0 0.0
  %1081 = vmatprep.subr.mxu0 0.0
  %1082 = vmatpush1.xpose.msra.mxu0 0.0
  %1083 = vmatprep.subr.mxu0 0.0
  %1084 = vmatpush1.xpose.msra.mxu0 0.0
  %1085 = vmatprep.subr.mxu0 0.0
  %1086 = vmatpush1.xpose.msra.mxu0 0.0
  %1087 = vmatprep.subr.mxu0 0.0
  %1088 = vmatpush1.xpose.msra.mxu0 0.0
  %1089 = vmatprep.subr.mxu0 0.0
  %1090 = vmatpush1.xpose.msra.mxu0 0.0
  %1091 = vmatprep.subr.mxu0 0.0
  %1092 = vmatpush1.xpose.msra.mxu0 0.0
  %1093 = vmatprep.subr.mxu0 0.0
  %1094 = vmatpush1.xpose.msra.mxu0 0.0
  %1095 = vmatprep.subr.mxu0 0.0
  %1096 = vmatpush1.xpose.msra.mxu0 0.0
  %1097 = vmatprep.subr.mxu0 0.0
  %1098 = vmatpush1.xpose.msra.mxu0 0.0
  %1099 = vmatprep.subr.mxu0 0.0
  %1100 = vmatpush1.xpose.msra.mxu0 0.0
  %1101 = vmatprep.subr.mxu0 0.0
  %1102 = vmatpush1.xpose.msra.mxu0 0.0
  %1103 = vmatprep.subr.mxu0 0.0
  %1104 = vmatpush1.xpose.msra.mxu0 0.0
  %1105 = vmatprep.subr.mxu0 0.0
  %1106 = vmatpush1.xpose.msra.mxu0 0.0
  %1107 = vmatprep.subr.mxu0 0.0
  %1108 = vmatpush1.xpose.msra.mxu0 0.0
  %1109 = vmatprep.subr.mxu0 0.0
  %1110 = vmatpush1.xpose.msra.mxu0 0.0
  %1111 = vmatprep.subr.mxu0 0.0
  %1112 = vmatpush1.xpose.msra.mxu0 0.0
  %1113 = vmatprep.mubr.f32.mxu0 0.0
  %1114 = vmatmul.mubr.f32.gmra.mrb[0].mxu0 %v1045
  %v1115 = vpop.f32.mrb[0].mxu0
  %v1116 = vadd.f32 0.0, %v1115
  %v1117 = vpop.f32.mrb[0].mxu0
  %1118 = vdwg.mxu0
  %v1119 = vsel %vm13, %v1116, -inf
  %1120 = vmax.xlane.f32.xlu0 %v1119
  %v1121 = vpop.xlane.xlu0 %1120
  %v1122 = vsub.f32 %v1116, %v1121
  %v1123 = vmul.f32 %v1122, 1.442695
  %v1124 = vpow.pop %v1123
  %v1125 = vsel %vm13, %v1124, 0.0
  %1126 = vadd.xlane.f32.xlu0 %v1125
  %v1127 = vpop.xlane.xlu0 %1126
  %1128 = vrot.lane.b32.xlu0 %v703, 80
  %v1129 = vpop.permute.xlu0 %1128
  %v1132 = vsel %vm13, %v1124, 0
  %1134 = vmatprep.subr.mxu0 0.0
  %1135 = vmatpush1.msra.mxu0 %v1129
  %1136 = vmatprep.subr.mxu0 0.0
  %1137 = vmatpush1.msra.mxu0 0.0
  %1138 = vmatprep.subr.mxu0 0.0
  %1139 = vmatpush1.msra.mxu0 0.0
  %1140 = vmatprep.subr.mxu0 0.0
  %1141 = vmatpush1.msra.mxu0 0.0
  %1142 = vmatprep.subr.mxu0 0.0
  %1143 = vmatpush1.msra.mxu0 0.0
  %1144 = vmatprep.subr.mxu0 0.0
  %1145 = vmatpush1.msra.mxu0 0.0
  %1146 = vmatprep.subr.mxu0 0.0
  %1147 = vmatpush1.msra.mxu0 0.0
  %1148 = vmatprep.subr.mxu0 0.0
  %1149 = vmatpush1.msra.mxu0 0.0
  %1150 = vmatprep.subr.mxu0 0.0
  %1151 = vmatpush1.msra.mxu0 0.0
  %1152 = vmatprep.subr.mxu0 0.0
  %1153 = vmatpush1.msra.mxu0 0.0
  %1154 = vmatprep.subr.mxu0 0.0
  %1155 = vmatpush1.msra.mxu0 0.0
  %1156 = vmatprep.subr.mxu0 0.0
  %1157 = vmatpush1.msra.mxu0 0.0
  %1158 = vmatprep.subr.mxu0 0.0
  %1159 = vmatpush1.msra.mxu0 0.0
  %1160 = vmatprep.subr.mxu0 0.0
  %1161 = vmatpush1.msra.mxu0 0.0
  %1162 = vmatprep.subr.mxu0 0.0
  %1163 = vmatpush1.msra.mxu0 0.0
  %1164 = vmatprep.subr.mxu0 0.0
  %1165 = vmatpush1.msra.mxu0 0.0
  %1166 = vmatprep.subr.mxu0 0.0
  %1167 = vmatpush1.msra.mxu0 0.0
  %1168 = vmatprep.subr.mxu0 0.0
  %1169 = vmatpush1.msra.mxu0 0.0
  %1170 = vmatprep.subr.mxu0 0.0
  %1171 = vmatpush1.msra.mxu0 0.0
  %1172 = vmatprep.subr.mxu0 0.0
  %1173 = vmatpush1.msra.mxu0 0.0
  %1174 = vmatprep.subr.mxu0 0.0
  %1175 = vmatpush1.msra.mxu0 0.0
  %1176 = vmatprep.subr.mxu0 0.0
  %1177 = vmatpush1.msra.mxu0 0.0
  %1178 = vmatprep.subr.mxu0 0.0
  %1179 = vmatpush1.msra.mxu0 0.0
  %1180 = vmatprep.subr.mxu0 0.0
  %1181 = vmatpush1.msra.mxu0 0.0
  %1182 = vmatprep.subr.mxu0 0.0
  %1183 = vmatpush1.msra.mxu0 0.0
  %1184 = vmatprep.subr.mxu0 0.0
  %1185 = vmatpush1.msra.mxu0 0.0
  %1186 = vmatprep.subr.mxu0 0.0
  %1187 = vmatpush1.msra.mxu0 0.0
  %1188 = vmatprep.subr.mxu0 0.0
  %1189 = vmatpush1.msra.mxu0 0.0
  %1190 = vmatprep.subr.mxu0 0.0
  %1191 = vmatpush1.msra.mxu0 0.0
  %1192 = vmatprep.subr.mxu0 0.0
  %1193 = vmatpush1.msra.mxu0 0.0
  %1194 = vmatprep.subr.mxu0 0.0
  %1195 = vmatpush1.msra.mxu0 0.0
  %1196 = vmatprep.subr.mxu0 0.0
  %1197 = vmatpush1.msra.mxu0 0.0
  %1198 = vmatprep.mubr.f32.mxu0 0.0
  %1199 = vmatmul.mubr.f32.gmra.mrb[0].mxu0 %v1132
  %v1200 = vpop.f32.mrb[0].mxu0
  %v1201 = vadd.f32 0.0, %v1200
  %v1202 = vpop.f32.mrb[0].mxu0
  %1203 = vdwg.mxu0
  %v1204 = vrcp.pop %v1127
  %v1205 = vmul.f32 %v1127, %v1204
  %v1206 = vsub.f32 2.0, %v1205
  %v1207 = vmul.f32 %v1204, %v1206
  %v1208 = vmul.f32 %v1201, %v1207
  %1209 = vrot.lane.b32.xlu0 %v704, 8
  %v1210 = vpop.permute.xlu0 %1209
  %1211 = vrot.lane.b32.xlu0 %v703, 104
  %v1212 = vpop.permute.xlu0 %1211
  %v1213 = vsel %vm13, %v1210, 0
  %v1215 = vsel %vm13, %v1212, 0
  %1217 = vmatprep.subr.mxu0 0.0
  %1218 = vmatpush1.xpose.msra.mxu0 %v1215
  %1219 = vmatprep.subr.mxu0 0.0
  %1220 = vmatpush1.xpose.msra.mxu0 0.0
  %1221 = vmatprep.subr.mxu0 0.0
  %1222 = vmatpush1.xpose.msra.mxu0 0.0
  %1223 = vmatprep.subr.mxu0 0.0
  %1224 = vmatpush1.xpose.msra.mxu0 0.0
  %1225 = vmatprep.subr.mxu0 0.0
  %1226 = vmatpush1.xpose.msra.mxu0 0.0
  %1227 = vmatprep.subr.mxu0 0.0
  %1228 = vmatpush1.xpose.msra.mxu0 0.0
  %1229 = vmatprep.subr.mxu0 0.0
  %1230 = vmatpush1.xpose.msra.mxu0 0.0
  %1231 = vmatprep.subr.mxu0 0.0
  %1232 = vmatpush1.xpose.msra.mxu0 0.0
  %1233 = vmatprep.subr.mxu0 0.0
  %1234 = vmatpush1.xpose.msra.mxu0 0.0
  %1235 = vmatprep.subr.mxu0 0.0
  %1236 = vmatpush1.xpose.msra.mxu0 0.0
  %1237 = vmatprep.subr.mxu0 0.0
  %1238 = vmatpush1.xpose.msra.mxu0 0.0
  %1239 = vmatprep.subr.mxu0 0.0
  %1240 = vmatpush1.xpose.msra.mxu0 0.0
  %1241 = vmatprep.subr.mxu0 0.0
  %1242 = vmatpush1.xpose.msra.mxu0 0.0
  %1243 = vmatprep.subr.mxu0 0.0
  %1244 = vmatpush1.xpose.msra.mxu0 0.0
  %1245 = vmatprep.subr.mxu0 0.0
  %1246 = vmatpush1.xpose.msra.mxu0 0.0
  %1247 = vmatprep.subr.mxu0 0.0
  %1248 = vmatpush1.xpose.msra.mxu0 0.0
  %1249 = vmatprep.subr.mxu0 0.0
  %1250 = vmatpush1.xpose.msra.mxu0 0.0
  %1251 = vmatprep.subr.mxu0 0.0
  %1252 = vmatpush1.xpose.msra.mxu0 0.0
  %1253 = vmatprep.subr.mxu0 0.0
  %1254 = vmatpush1.xpose.msra.mxu0 0.0
  %1255 = vmatprep.subr.mxu0 0.0
  %1256 = vmatpush1.xpose.msra.mxu0 0.0
  %1257 = vmatprep.subr.mxu0 0.0
  %1258 = vmatpush1.xpose.msra.mxu0 0.0
  %1259 = vmatprep.subr.mxu0 0.0
  %1260 = vmatpush1.xpose.msra.mxu0 0.0
  %1261 = vmatprep.subr.mxu0 0.0
  %1262 = vmatpush1.xpose.msra.mxu0 0.0
  %1263 = vmatprep.subr.mxu0 0.0
  %1264 = vmatpush1.xpose.msra.mxu0 0.0
  %1265 = vmatprep.subr.mxu0 0.0
  %1266 = vmatpush1.xpose.msra.mxu0 0.0
  %1267 = vmatprep.subr.mxu0 0.0
  %1268 = vmatpush1.xpose.msra.mxu0 0.0
  %1269 = vmatprep.subr.mxu0 0.0
  %1270 = vmatpush1.xpose.msra.mxu0 0.0
  %1271 = vmatprep.subr.mxu0 0.0
  %1272 = vmatpush1.xpose.msra.mxu0 0.0
  %1273 = vmatprep.subr.mxu0 0.0
  %1274 = vmatpush1.xpose.msra.mxu0 0.0
  %1275 = vmatprep.subr.mxu0 0.0
  %1276 = vmatpush1.xpose.msra.mxu0 0.0
  %1277 = vmatprep.subr.mxu0 0.0
  %1278 = vmatpush1.xpose.msra.mxu0 0.0
  %1279 = vmatprep.subr.mxu0 0.0
  %1280 = vmatpush1.xpose.msra.mxu0 0.0
  %1281 = vmatprep.mubr.f32.mxu0 0.0
  %1282 = vmatmul.mubr.f32.gmra.mrb[0].mxu0 %v1213
  %v1283 = vpop.f32.mrb[0].mxu0
  %v1284 = vadd.f32 0.0, %v1283
  %v1285 = vpop.f32.mrb[0].mxu0
  %1286 = vdwg.mxu0
  %v1287 = vsel %vm13, %v1284, -inf
  %1288 = vmax.xlane.f32.xlu0 %v1287
  %v1289 = vpop.xlane.xlu0 %1288
  %v1290 = vsub.f32 %v1284, %v1289
  %v1291 = vmul.f32 %v1290, 1.442695
  %v1292 = vpow.pop %v1291
  %v1293 = vsel %vm13, %v1292, 0.0
  %1294 = vadd.xlane.f32.xlu0 %v1293
  %v1295 = vpop.xlane.xlu0 %1294
  %1296 = vrot.lane.b32.xlu0 %v703, 72
  %v1297 = vpop.permute.xlu0 %1296
  %v1300 = vsel %vm13, %v1292, 0
  %1302 = vmatprep.subr.mxu0 0.0
  %1303 = vmatpush1.msra.mxu0 %v1297
  %1304 = vmatprep.subr.mxu0 0.0
  %1305 = vmatpush1.msra.mxu0 0.0
  %1306 = vmatprep.subr.mxu0 0.0
  %1307 = vmatpush1.msra.mxu0 0.0
  %1308 = vmatprep.subr.mxu0 0.0
  %1309 = vmatpush1.msra.mxu0 0.0
  %1310 = vmatprep.subr.mxu0 0.0
  %1311 = vmatpush1.msra.mxu0 0.0
  %1312 = vmatprep.subr.mxu0 0.0
  %1313 = vmatpush1.msra.mxu0 0.0
  %1314 = vmatprep.subr.mxu0 0.0
  %1315 = vmatpush1.msra.mxu0 0.0
  %1316 = vmatprep.subr.mxu0 0.0
  %1317 = vmatpush1.msra.mxu0 0.0
  %1318 = vmatprep.subr.mxu0 0.0
  %1319 = vmatpush1.msra.mxu0 0.0
  %1320 = vmatprep.subr.mxu0 0.0
  %1321 = vmatpush1.msra.mxu0 0.0
  %1322 = vmatprep.subr.mxu0 0.0
  %1323 = vmatpush1.msra.mxu0 0.0
  %1324 = vmatprep.subr.mxu0 0.0
  %1325 = vmatpush1.msra.mxu0 0.0
  %1326 = vmatprep.subr.mxu0 0.0
  %1327 = vmatpush1.msra.mxu0 0.0
  %1328 = vmatprep.subr.mxu0 0.0
  %1329 = vmatpush1.msra.mxu0 0.0
  %1330 = vmatprep.subr.mxu0 0.0
  %1331 = vmatpush1.msra.mxu0 0.0
  %1332 = vmatprep.subr.mxu0 0.0
  %1333 = vmatpush1.msra.mxu0 0.0
  %1334 = vmatprep.subr.mxu0 0.0
  %1335 = vmatpush1.msra.mxu0 0.0
  %1336 = vmatprep.subr.mxu0 0.0
  %1337 = vmatpush1.msra.mxu0 0.0
  %1338 = vmatprep.subr.mxu0 0.0
  %1339 = vmatpush1.msra.mxu0 0.0
  %1340 = vmatprep.subr.mxu0 0.0
  %1341 = vmatpush1.msra.mxu0 0.0
  %1342 = vmatprep.subr.mxu0 0.0
  %1343 = vmatpush1.msra.mxu0 0.0
  %1344 = vmatprep.subr.mxu0 0.0
  %1345 = vmatpush1.msra.mxu0 0.0
  %1346 = vmatprep.subr.mxu0 0.0
  %1347 = vmatpush1.msra.mxu0 0.0
  %1348 = vmatprep.subr.mxu0 0.0
  %1349 = vmatpush1.msra.mxu0 0.0
  %1350 = vmatprep.subr.mxu0 0.0
  %1351 = vmatpush1.msra.mxu0 0.0
  %1352 = vmatprep.subr.mxu0 0.0
  %1353 = vmatpush1.msra.mxu0 0.0
  %1354 = vmatprep.subr.mxu0 0.0
  %1355 = vmatpush1.msra.mxu0 0.0
  %1356 = vmatprep.subr.mxu0 0.0
  %1357 = vmatpush1.msra.mxu0 0.0
  %1358 = vmatprep.subr.mxu0 0.0
  %1359 = vmatpush1.msra.mxu0 0.0
  %1360 = vmatprep.subr.mxu0 0.0
  %1361 = vmatpush1.msra.mxu0 0.0
  %1362 = vmatprep.subr.mxu0 0.0
  %1363 = vmatpush1.msra.mxu0 0.0
  %1364 = vmatprep.subr.mxu0 0.0
  %1365 = vmatpush1.msra.mxu0 0.0
  %1366 = vmatprep.mubr.f32.mxu0 0.0
  %1367 = vmatmul.mubr.f32.gmra.mrb[0].mxu0 %v1300
  %v1368 = vpop.f32.mrb[0].mxu0
  %v1369 = vadd.f32 0.0, %v1368
  %v1370 = vpop.f32.mrb[0].mxu0
  %1371 = vdwg.mxu0
  %v1372 = vrcp.pop %v1295
  %v1373 = vmul.f32 %v1295, %v1372
  %v1374 = vsub.f32 2.0, %v1373
  %v1375 = vmul.f32 %v1372, %v1374
  %v1376 = vmul.f32 %v1369, %v1375
  %1378 = vrot.lane.b32.xlu0 %v1040, 8
  %v1379 = vpop.permute.xlu0 %1378
  %1382 = vrot.lane.b32.xlu0 %v1208, 16
  %v1383 = vpop.permute.xlu0 %1382
  %1386 = vrot.lane.b32.xlu0 %v1376, 24
  %v1387 = vpop.permute.xlu0 %1386
  %v1389 = vsel %vm13, %v872, %v1379
  %v1390 = vsel %vm696, %v1389, %v1383
  %v1391 = vsel %vm698, %v1390, %v1387
  %1393 = vrot.lane.b32.xlu0 %v1391, 32
  %v1394 = vpop.permute.xlu0 %1393
  %vm1396 = vcmask 523520
  %1397 = vst.msk [vmem:[%s1] sm:$0xff] %vm1396, %v1394
  // Predicated region
  $region6: #{encoder_layer_forward.4} parent=0 // pred_check
    _
  $region7: #{encoder_layer_forward.4} parent=0 // pred_check_branch
    %1399 = sbr.rel (0) target = $region9
  $region8: #{encoder_layer_forward.4} parent=0 // pred_region
    _
  $region9: #{encoder_layer_forward.4} parent=0 // pred_fallthru
    _
  // Predicated region
  $region10: #{encoder_layer_forward.4} parent=0 // pred_check
    _
  $region11: #{encoder_layer_forward.4} parent=0 // pred_check_branch
    %1401 = sbr.rel (0) target = $region13
  $region12: #{encoder_layer_forward.4} parent=0 // pred_region
    _
  $region13: #{encoder_layer_forward.4} parent=0 // pred_fallthru
    _

// kernel: encoder_layer_forward.5
$region0: #{encoder_layer_forward.5}
  #allocation0 [shape = 'u32[]', space=smem, size = 0x4, offset = 0x4, fixed_abs, tag = 'smem constant byte address 0x4 - core index']
  #allocation1 [shape = 'u32[144,128]{1,0:T(1,128)}', space=vmem, size = 0x12000, scoped, tag = 'internal scratch']
  %s0 = inlined_call_operand.vmem [shape: f32[16,32], index: 0, kind: input, shape index: {}]
  %s1 = inlined_call_operand.vmem [shape: f32[16,32], index: 1, kind: input, shape index: {}]
  %s2 = inlined_call_operand.vmem [shape: f32[32,32], index: 2, kind: input, shape index: {}]
  %s3 = inlined_call_operand.vmem [shape: f32[1,32], index: 3, kind: input, shape index: {}]
  %s4 = inlined_call_operand.vmem [shape: f32[1,32], index: 4, kind: input, shape index: {}]
  %s5 = inlined_call_operand.vmem [shape: f32[1,32], index: 5, kind: input, shape index: {}]
  %s6 = inlined_call_operand.vmem [shape: f32[32,64], index: 6, kind: input, shape index: {}]
  %s7 = inlined_call_operand.vmem [shape: f32[1,64], index: 7, kind: input, shape index: {}]
  %s8 = inlined_call_operand.vmem [shape: f32[64,32], index: 8, kind: input, shape index: {}]
  %s9 = inlined_call_operand.vmem [shape: f32[1,32], index: 9, kind: input, shape index: {}]
  %s10 = inlined_call_operand.hbm [shape: f32[16,32], index: 10, kind: output, shape index: {}]
  %s11 = sld [smem:[#allocation0]]
  $region50: #{encoder_layer_forward.5} parent=0
    _
  %s13 = ssub.s32 1, %s11
  %s14 = scalar_select 0, %s13, %s11
  $region1: #{encoder_layer_forward.5} parent=0
    #allocation2 [shape = 'u8[8192]{0}', space=vmem, size = 0x2000, scoped, tag = 'output window, operand 0, single buffered']
    #allocation3 [shape = 's32[1]{0}', space=sflag, size = 0x4, scoped, tag = 'scoped memory for encoder_layer_forward.5']
    %15 = vsyncpa [#allocation3], 0
    // Predicated region
    $region2: #{encoder_layer_forward.5} parent=1 // pred_check
      _
    $region3: #{encoder_layer_forward.5} parent=1 // pred_check_branch
      %17 = sbr.rel (0) target = $region5
    $region4: #{encoder_layer_forward.5} parent=1 // pred_region
      _
    $region5: #{encoder_layer_forward.5} parent=1 // pred_fallthru
      _
    // Predicated region
    $region6: #{encoder_layer_forward.5} parent=1 // pred_check
      _
    $region7: #{encoder_layer_forward.5} parent=1 // pred_check_branch
      %19 = sbr.rel (0) target = $region9
    $region8: #{encoder_layer_forward.5} parent=1 // pred_region
      _
    $region9: #{encoder_layer_forward.5} parent=1 // pred_fallthru
      _
    // Predicated region
    $region10: #{encoder_layer_forward.5} parent=1 // pred_check
      _
    $region11: #{encoder_layer_forward.5} parent=1 // pred_check_branch
      %21 = sbr.rel (0) target = $region13
    $region12: #{encoder_layer_forward.5} parent=1 // pred_region
      _
    $region13: #{encoder_layer_forward.5} parent=1 // pred_fallthru
      _
    // Predicated region
    $region14: #{encoder_layer_forward.5} parent=1 // pred_check
      _
    $region15: #{encoder_layer_forward.5} parent=1 // pred_check_branch
      %23 = sbr.rel (0) target = $region17
    $region16: #{encoder_layer_forward.5} parent=1 // pred_region
      _
    $region17: #{encoder_layer_forward.5} parent=1 // pred_fallthru
      _
    // Predicated region
    $region18: #{encoder_layer_forward.5} parent=1 // pred_check
      _
    $region19: #{encoder_layer_forward.5} parent=1 // pred_check_branch
      %25 = sbr.rel (0) target = $region21
    $region20: #{encoder_layer_forward.5} parent=1 // pred_region
      _
    $region21: #{encoder_layer_forward.5} parent=1 // pred_fallthru
      _
    // Predicated region
    $region22: #{encoder_layer_forward.5} parent=1 // pred_check
      _
    $region23: #{encoder_layer_forward.5} parent=1 // pred_check_branch
      %27 = sbr.rel (0) target = $region25
    $region24: #{encoder_layer_forward.5} parent=1 // pred_region
      _
    $region25: #{encoder_layer_forward.5} parent=1 // pred_fallthru
      _
    // Predicated region
    $region26: #{encoder_layer_forward.5} parent=1 // pred_check
      _
    $region27: #{encoder_layer_forward.5} parent=1 // pred_check_branch
      %29 = sbr.rel (0) target = $region29
    $region28: #{encoder_layer_forward.5} parent=1 // pred_region
      _
    $region29: #{encoder_layer_forward.5} parent=1 // pred_fallthru
      _
    // Predicated region
    $region30: #{encoder_layer_forward.5} parent=1 // pred_check
      _
    $region31: #{encoder_layer_forward.5} parent=1 // pred_check_branch
      %31 = sbr.rel (0) target = $region33
    $region32: #{encoder_layer_forward.5} parent=1 // pred_region
      _
    $region33: #{encoder_layer_forward.5} parent=1 // pred_fallthru
      _
    // Predicated region
    $region34: #{encoder_layer_forward.5} parent=1 // pred_check
      _
    $region35: #{encoder_layer_forward.5} parent=1 // pred_check_branch
      %33 = sbr.rel (0) target = $region37
    $region36: #{encoder_layer_forward.5} parent=1 // pred_region
      _
    $region37: #{encoder_layer_forward.5} parent=1 // pred_fallthru
      _
    // Predicated region
    $region38: #{encoder_layer_forward.5} parent=1 // pred_check
      _
    $region39: #{encoder_layer_forward.5} parent=1 // pred_check_branch
      %35 = sbr.rel (0) target = $region41
    $region40: #{encoder_layer_forward.5} parent=1 // pred_region
      _
    $region41: #{encoder_layer_forward.5} parent=1 // pred_fallthru
      _
    %v36 = vld [vmem:[%s1] sm:$0xff]
    %v37 = vld [vmem:[%s1 + $0x8] sm:$0xff]
    %v38 = vld [vmem:[%s0] sm:$0xff]
    %v39 = vld [vmem:[%s0 + $0x8] sm:$0xff]
    %v40 = vld [vmem:[%s2] sm:$0xff]
    %v41 = vld [vmem:[%s2 + $0x8] sm:$0xff]
    %v42 = vld [vmem:[%s2 + $0x10] sm:$0xff]
    %v43 = vld [vmem:[%s2 + $0x18] sm:$0xff]
    %vm44 = vcmask 261120
    %v46 = vsel %vm44, %v38, 0
    %v49 = vsel %vm44, %v39, 0
    %51 = vmatprep.subr.mxu0 0.0
    %52 = vmatpush1.msra.mxu0 %v40
    %53 = vmatprep.subr.mxu0 0.0
    %54 = vmatpush1.msra.mxu0 %v41
    %55 = vmatprep.subr.mxu0 0.0
    %56 = vmatpush1.msra.mxu0 %v42
    %57 = vmatprep.subr.mxu0 0.0
    %58 = vmatpush1.msra.mxu0 %v43
    %59 = vmatprep.subr.mxu0 0.0
    %60 = vmatpush1.msra.mxu0 0.0
    %61 = vmatprep.subr.mxu0 0.0
    %62 = vmatpush1.msra.mxu0 0.0
    %63 = vmatprep.subr.mxu0 0.0
    %64 = vmatpush1.msra.mxu0 0.0
    %65 = vmatprep.subr.mxu0 0.0
    %66 = vmatpush1.msra.mxu0 0.0
    %67 = vmatprep.subr.mxu0 0.0
    %68 = vmatpush1.msra.mxu0 0.0
    %69 = vmatprep.subr.mxu0 0.0
    %70 = vmatpush1.msra.mxu0 0.0
    %71 = vmatprep.subr.mxu0 0.0
    %72 = vmatpush1.msra.mxu0 0.0
    %73 = vmatprep.subr.mxu0 0.0
    %74 = vmatpush1.msra.mxu0 0.0
    %75 = vmatprep.subr.mxu0 0.0
    %76 = vmatpush1.msra.mxu0 0.0
    %77 = vmatprep.subr.mxu0 0.0
    %78 = vmatpush1.msra.mxu0 0.0
    %79 = vmatprep.subr.mxu0 0.0
    %80 = vmatpush1.msra.mxu0 0.0
    %81 = vmatprep.subr.mxu0 0.0
    %82 = vmatpush1.msra.mxu0 0.0
    %83 = vmatprep.subr.mxu0 0.0
    %84 = vmatpush1.msra.mxu0 0.0
    %85 = vmatprep.subr.mxu0 0.0
    %86 = vmatpush1.msra.mxu0 0.0
    %87 = vmatprep.subr.mxu0 0.0
    %88 = vmatpush1.msra.mxu0 0.0
    %89 = vmatprep.subr.mxu0 0.0
    %90 = vmatpush1.msra.mxu0 0.0
    %91 = vmatprep.subr.mxu0 0.0
    %92 = vmatpush1.msra.mxu0 0.0
    %93 = vmatprep.subr.mxu0 0.0
    %94 = vmatpush1.msra.mxu0 0.0
    %95 = vmatprep.subr.mxu0 0.0
    %96 = vmatpush1.msra.mxu0 0.0
    %97 = vmatprep.subr.mxu0 0.0
    %98 = vmatpush1.msra.mxu0 0.0
    %99 = vmatprep.subr.mxu0 0.0
    %100 = vmatpush1.msra.mxu0 0.0
    %101 = vmatprep.subr.mxu0 0.0
    %102 = vmatpush1.msra.mxu0 0.0
    %103 = vmatprep.subr.mxu0 0.0
    %104 = vmatpush1.msra.mxu0 0.0
    %105 = vmatprep.subr.mxu0 0.0
    %106 = vmatpush1.msra.mxu0 0.0
    %107 = vmatprep.subr.mxu0 0.0
    %108 = vmatpush1.msra.mxu0 0.0
    %109 = vmatprep.subr.mxu0 0.0
    %110 = vmatpush1.msra.mxu0 0.0
    %111 = vmatprep.subr.mxu0 0.0
    %112 = vmatpush1.msra.mxu0 0.0
    %113 = vmatprep.subr.mxu0 0.0
    %114 = vmatpush1.msra.mxu0 0.0
    %115 = vmatprep.mubr.f32.mxu0 0.0
    %116 = vmatmul.mubr.f32.gmra.mrb[0].mxu0 %v46
    %v117 = vpop.f32.mrb[0].mxu0
    %v118 = vadd.f32 0.0, %v117
    %v119 = vpop.f32.mrb[0].mxu0
    %120 = vmatprep.mubr.f32.mxu0 0.0
    %121 = vmatmul.mubr.f32.gmra.mrb[0].mxu0 %v49
    %v122 = vpop.f32.mrb[0].mxu0
    %v123 = vadd.f32 0.0, %v122
    %v124 = vpop.f32.mrb[0].mxu0
    %125 = vdwg.mxu0
    %v126 = vadd.f32 %v36, %v118
    %v127 = vadd.f32 %v37, %v123
    %v128 = vld [vmem:[%s3] sm:$0x1]
    %v130 = vlaneseq
    %v131 = vshrl.u32 %v130, 7
    %v132 = vsub.s32 0, %v131
    %v133 = vrot.slane %v128, %v132
    %v135 = vadd.f32 %v126, %v133
    %v136 = vadd.f32 %v127, %v133
    %v137 = vsel %vm44, %v135, 0.0
    %138 = vadd.xlane.f32.xlu0 %v137
    %v139 = vpop.xlane.xlu0 %138
    %v140 = vsel %vm44, %v136, 0.0
    %141 = vadd.xlane.f32.xlu0 %v140
    %v142 = vpop.xlane.xlu0 %141
    %v143 = vrcp.pop 32.0
    %v144 = vmul.f32 %v139, %v143
    %v145 = vmul.f32 %v142, %v143
    %v146 = vsub.f32 %v135, %v144
    %v147 = vsub.f32 %v136, %v145
    %v148 = vmul.f32 %v146, %v146
    %v149 = vmul.f32 %v147, %v147
    %v150 = vsel %vm44, %v148, 0.0
    %151 = vadd.xlane.f32.xlu0 %v150
    %v152 = vpop.xlane.xlu0 %151
    %v153 = vsel %vm44, %v149, 0.0
    %154 = vadd.xlane.f32.xlu0 %v153
    %v155 = vpop.xlane.xlu0 %154
    %v156 = vmul.f32 %v152, %v143
    %v157 = vmul.f32 %v155, %v143
    %v158 = vadd.f32 %v156, 1e-05
    %v159 = vadd.f32 %v157, 1e-05
    %v160 = vrsqrt.pop %v158
    %v161 = vrsqrt.pop %v159
    %v162 = vmul.f32 %v146, %v160
    %v163 = vmul.f32 %v147, %v161
    %v164 = vld [vmem:[%s4] sm:$0x1]
    %v166 = vlaneseq
    %v167 = vshrl.u32 %v166, 7
    %v168 = vsub.s32 0, %v167
    %v169 = vrot.slane %v164, %v168
    %v171 = vmul.f32 %v162, %v169
    %v172 = vmul.f32 %v163, %v169
    %v173 = vld [vmem:[%s5] sm:$0x1]
    %v175 = vlaneseq
    %v176 = vshrl.u32 %v175, 7
    %v177 = vsub.s32 0, %v176
    %v178 = vrot.slane %v173, %v177
    %v180 = vadd.f32 %v171, %v178
    %v181 = vadd.f32 %v172, %v178
    %v182 = vld [vmem:[%s6] sm:$0xff]
    %v183 = vld [vmem:[%s6 + $0x8] sm:$0xff]
    %v184 = vld [vmem:[%s6 + $0x10] sm:$0xff]
    %v185 = vld [vmem:[%s6 + $0x18] sm:$0xff]
    %v186 = vld [vmem:[%s7] sm:$0x1]
    %v188 = vlaneseq
    %v189 = vshrl.u32 %v188, 7
    %v190 = vsub.s32 0, %v189
    %v191 = vrot.slane %v186, %v190
    %v194 = vsel %vm44, %v180, 0
    %v197 = vsel %vm44, %v181, 0
    %199 = vmatprep.subr.mxu0 0.0
    %200 = vmatpush1.msra.mxu0 %v182
    %201 = vmatprep.subr.mxu0 0.0
    %202 = vmatpush1.msra.mxu0 %v183
    %203 = vmatprep.subr.mxu0 0.0
    %204 = vmatpush1.msra.mxu0 %v184
    %205 = vmatprep.subr.mxu0 0.0
    %206 = vmatpush1.msra.mxu0 %v185
    %207 = vmatprep.subr.mxu0 0.0
    %208 = vmatpush1.msra.mxu0 0.0
    %209 = vmatprep.subr.mxu0 0.0
    %210 = vmatpush1.msra.mxu0 0.0
    %211 = vmatprep.subr.mxu0 0.0
    %212 = vmatpush1.msra.mxu0 0.0
    %213 = vmatprep.subr.mxu0 0.0
    %214 = vmatpush1.msra.mxu0 0.0
    %215 = vmatprep.subr.mxu0 0.0
    %216 = vmatpush1.msra.mxu0 0.0
    %217 = vmatprep.subr.mxu0 0.0
    %218 = vmatpush1.msra.mxu0 0.0
    %219 = vmatprep.subr.mxu0 0.0
    %220 = vmatpush1.msra.mxu0 0.0
    %221 = vmatprep.subr.mxu0 0.0
    %222 = vmatpush1.msra.mxu0 0.0
    %223 = vmatprep.subr.mxu0 0.0
    %224 = vmatpush1.msra.mxu0 0.0
    %225 = vmatprep.subr.mxu0 0.0
    %226 = vmatpush1.msra.mxu0 0.0
    %227 = vmatprep.subr.mxu0 0.0
    %228 = vmatpush1.msra.mxu0 0.0
    %229 = vmatprep.subr.mxu0 0.0
    %230 = vmatpush1.msra.mxu0 0.0
    %231 = vmatprep.subr.mxu0 0.0
    %232 = vmatpush1.msra.mxu0 0.0
    %233 = vmatprep.subr.mxu0 0.0
    %234 = vmatpush1.msra.mxu0 0.0
    %235 = vmatprep.subr.mxu0 0.0
    %236 = vmatpush1.msra.mxu0 0.0
    %237 = vmatprep.subr.mxu0 0.0
    %238 = vmatpush1.msra.mxu0 0.0
    %239 = vmatprep.subr.mxu0 0.0
    %240 = vmatpush1.msra.mxu0 0.0
    %241 = vmatprep.subr.mxu0 0.0
    %242 = vmatpush1.msra.mxu0 0.0
    %243 = vmatprep.subr.mxu0 0.0
    %244 = vmatpush1.msra.mxu0 0.0
    %245 = vmatprep.subr.mxu0 0.0
    %246 = vmatpush1.msra.mxu0 0.0
    %247 = vmatprep.subr.mxu0 0.0
    %248 = vmatpush1.msra.mxu0 0.0
    %249 = vmatprep.subr.mxu0 0.0
    %250 = vmatpush1.msra.mxu0 0.0
    %251 = vmatprep.subr.mxu0 0.0
    %252 = vmatpush1.msra.mxu0 0.0
    %253 = vmatprep.subr.mxu0 0.0
    %254 = vmatpush1.msra.mxu0 0.0
    %255 = vmatprep.subr.mxu0 0.0
    %256 = vmatpush1.msra.mxu0 0.0
    %257 = vmatprep.subr.mxu0 0.0
    %258 = vmatpush1.msra.mxu0 0.0
    %259 = vmatprep.subr.mxu0 0.0
    %260 = vmatpush1.msra.mxu0 0.0
    %261 = vmatprep.subr.mxu0 0.0
    %262 = vmatpush1.msra.mxu0 0.0
    %263 = vmatprep.mubr.f32.mxu0 0.0
    %264 = vmatmul.mubr.f32.gmra.mrb[0].mxu0 %v194
    %v265 = vpop.f32.mrb[0].mxu0
    %v266 = vadd.f32 %v191, %v265
    %v267 = vpop.f32.mrb[0].mxu0
    %268 = vmatprep.mubr.f32.mxu0 0.0
    %269 = vmatmul.mubr.f32.gmra.mrb[0].mxu0 %v197
    %v270 = vpop.f32.mrb[0].mxu0
    %v271 = vadd.f32 %v191, %v270
    %v272 = vpop.f32.mrb[0].mxu0
    %273 = vdwg.mxu0
    %v274 = vmax.f32 %v266, 0.0
    %v275 = vmax.f32 %v271, 0.0
    %v276 = vld [vmem:[%s8] sm:$0xff]
    %v277 = vld [vmem:[%s8 + $0x8] sm:$0xff]
    %v278 = vld [vmem:[%s8 + $0x10] sm:$0xff]
    %v279 = vld [vmem:[%s8 + $0x18] sm:$0xff]
    %v280 = vld [vmem:[%s8 + $0x20] sm:$0xff]
    %v281 = vld [vmem:[%s8 + $0x28] sm:$0xff]
    %v282 = vld [vmem:[%s8 + $0x30] sm:$0xff]
    %v283 = vld [vmem:[%s8 + $0x38] sm:$0xff]
    %vm284 = vcmask 523264
    %v286 = vsel %vm284, %v274, 0
    %v289 = vsel %vm284, %v275, 0
    %291 = vmatprep.subr.mxu0 0.0
    %292 = vmatpush1.msra.mxu0 %v276
    %293 = vmatprep.subr.mxu0 0.0
    %294 = vmatpush1.msra.mxu0 %v277
    %295 = vmatprep.subr.mxu0 0.0
    %296 = vmatpush1.msra.mxu0 %v278
    %297 = vmatprep.subr.mxu0 0.0
    %298 = vmatpush1.msra.mxu0 %v279
    %299 = vmatprep.subr.mxu0 0.0
    %300 = vmatpush1.msra.mxu0 %v280
    %301 = vmatprep.subr.mxu0 0.0
    %302 = vmatpush1.msra.mxu0 %v281
    %303 = vmatprep.subr.mxu0 0.0
    %304 = vmatpush1.msra.mxu0 %v282
    %305 = vmatprep.subr.mxu0 0.0
    %306 = vmatpush1.msra.mxu0 %v283
    %307 = vmatprep.subr.mxu0 0.0
    %308 = vmatpush1.msra.mxu0 0.0
    %309 = vmatprep.subr.mxu0 0.0
    %310 = vmatpush1.msra.mxu0 0.0
    %311 = vmatprep.subr.mxu0 0.0
    %312 = vmatpush1.msra.mxu0 0.0
    %313 = vmatprep.subr.mxu0 0.0
    %314 = vmatpush1.msra.mxu0 0.0
    %315 = vmatprep.subr.mxu0 0.0
    %316 = vmatpush1.msra.mxu0 0.0
    %317 = vmatprep.subr.mxu0 0.0
    %318 = vmatpush1.msra.mxu0 0.0
    %319 = vmatprep.subr.mxu0 0.0
    %320 = vmatpush1.msra.mxu0 0.0
    %321 = vmatprep.subr.mxu0 0.0
    %322 = vmatpush1.msra.mxu0 0.0
    %323 = vmatprep.subr.mxu0 0.0
    %324 = vmatpush1.msra.mxu0 0.0
    %325 = vmatprep.subr.mxu0 0.0
    %326 = vmatpush1.msra.mxu0 0.0
    %327 = vmatprep.subr.mxu0 0.0
    %328 = vmatpush1.msra.mxu0 0.0
    %329 = vmatprep.subr.mxu0 0.0
    %330 = vmatpush1.msra.mxu0 0.0
    %331 = vmatprep.subr.mxu0 0.0
    %332 = vmatpush1.msra.mxu0 0.0
    %333 = vmatprep.subr.mxu0 0.0
    %334 = vmatpush1.msra.mxu0 0.0
    %335 = vmatprep.subr.mxu0 0.0
    %336 = vmatpush1.msra.mxu0 0.0
    %337 = vmatprep.subr.mxu0 0.0
    %338 = vmatpush1.msra.mxu0 0.0
    %339 = vmatprep.subr.mxu0 0.0
    %340 = vmatpush1.msra.mxu0 0.0
    %341 = vmatprep.subr.mxu0 0.0
    %342 = vmatpush1.msra.mxu0 0.0
    %343 = vmatprep.subr.mxu0 0.0
    %344 = vmatpush1.msra.mxu0 0.0
    %345 = vmatprep.subr.mxu0 0.0
    %346 = vmatpush1.msra.mxu0 0.0
    %347 = vmatprep.subr.mxu0 0.0
    %348 = vmatpush1.msra.mxu0 0.0
    %349 = vmatprep.subr.mxu0 0.0
    %350 = vmatpush1.msra.mxu0 0.0
    %351 = vmatprep.subr.mxu0 0.0
    %352 = vmatpush1.msra.mxu0 0.0
    %353 = vmatprep.subr.mxu0 0.0
    %354 = vmatpush1.msra.mxu0 0.0
    %355 = vmatprep.mubr.f32.mxu0 0.0
    %356 = vmatmul.mubr.f32.gmra.mrb[0].mxu0 %v286
    %v357 = vpop.f32.mrb[0].mxu0
    %v358 = vadd.f32 0.0, %v357
    %v359 = vpop.f32.mrb[0].mxu0
    %360 = vmatprep.mubr.f32.mxu0 0.0
    %361 = vmatmul.mubr.f32.gmra.mrb[0].mxu0 %v289
    %v362 = vpop.f32.mrb[0].mxu0
    %v363 = vadd.f32 0.0, %v362
    %v364 = vpop.f32.mrb[0].mxu0
    %365 = vdwg.mxu0
    %v366 = vadd.f32 %v135, %v358
    %v367 = vadd.f32 %v136, %v363
    %v368 = vld [vmem:[%s9] sm:$0x1]
    %v370 = vlaneseq
    %v371 = vshrl.u32 %v370, 7
    %v372 = vsub.s32 0, %v371
    %v373 = vrot.slane %v368, %v372
    %v375 = vadd.f32 %v366, %v373
    %v376 = vadd.f32 %v367, %v373
    %377 = vst.msk [vmem:[#allocation2] sm:$0xff] %vm44, %v375
    %378 = vst.msk [vmem:[#allocation2 + $0x8] sm:$0xff] %vm44, %v376
    // Predicated region
    $region42: #{encoder_layer_forward.5} parent=1 // pred_check
      _
    $region43: #{encoder_layer_forward.5} parent=1 // pred_check_branch
      %380 = sbr.rel (0) target = $region45
    $region44: #{encoder_layer_forward.5} parent=1 // pred_region
      %s382 = ssub.s32 256, 256
      %383 = vsyncadd [#allocation3], %s382
      %s384 = sshll.u32 [#allocation2], 4
      %s385 = int_to_ptr.vmem [resolvable:$true] %s384
      %390 = dma.vmem_to_hbm [thread:$0]  %s385, 256, %s10, [#allocation3], 128, 128, 8
    $region45: #{encoder_layer_forward.5} parent=1 // pred_fallthru
      _
    // Predicated region
    $region46: #{encoder_layer_forward.5} parent=1 // pred_check
      _
    $region47: #{encoder_layer_forward.5} parent=1 // pred_check_branch
      %392 = sbr.rel (0) target = $region49
    $region48: #{encoder_layer_forward.5} parent=1 // pred_region
      %393 = dma.done [#allocation3], 256
    $region49: #{encoder_layer_forward.5} parent=1 // pred_fallthru
      _
    %394 = vsyncpa [#allocation3], 1

</llo_original>
